<compile_context>
chip_gen: v7x
topology: tpu7x:2x2x1
jax: 0.10.0
libtpu: 0.0.40
codegen_flags: <defaults>
</compile_context>

<pallas_src>
from functools import partial

import jax
import jax.numpy as jnp
from jax.experimental import pallas as pl
from jax.experimental.pallas import tpu as pltpu


LANE = 128  # TPU vreg lane width


def _round_up(x, m):
    return (x + m - 1) // m * m


def _resident_spec(shape):
    """Whole-array, constant-index block: fetched once, stays VMEM-resident.

    Constant index_map inputs don't need double-buffering, so ask for a single
    buffer (halves resident-weight VMEM; matters most on v7x's 64 MiB).  Falls
    back gracefully if this Pallas build doesn't take pipeline_mode.
    """
    idx = lambda i: (0, 0)
    try:
        return pl.BlockSpec(shape, idx, pipeline_mode=pl.Buffered(1))
    except (TypeError, AttributeError):
        return pl.BlockSpec(shape, idx)


# ----------------------------------------------------------------------------
# Pallas kernel: one batch tile of
#   bottom MLP -> pairwise dot interactions -> top MLP (lane-dense logits)
# ----------------------------------------------------------------------------
def dlrm_kernel(dense_ref, emb_ref,
                wd0_ref, bd0_ref, wd1_ref, bd1_ref,
                wo0d_ref, wo0p_ref, bo0_ref,
                wo1_ref, bo1_ref, wo2t_ref, bo2_ref,
                out_ref):
    cdt = dense_ref.dtype                                     # compute dtype (bf16/f32)

    # ---- dense (bottom) arch: Linear + ReLU, Linear + ReLU ----
    x = dense_ref[...]                                        # (TB, dense_in)
    h = jnp.dot(x, wd0_ref[...], preferred_element_type=jnp.float32) + bd0_ref[...]
    h = jnp.maximum(h, 0.0).astype(cdt)
    d32 = jnp.dot(h, wd1_ref[...], preferred_element_type=jnp.float32) + bd1_ref[...]
    d32 = jnp.maximum(d32, 0.0)                               # (TB, D) f32
    d = d32.astype(cdt)

    emb_dim = wd1_ref.shape[1]
    emb = emb_ref[...]                                        # (TB, F*D) lane-concatenated
    num_sparse = emb.shape[1] // emb_dim
    feats = [d] + [emb[:, f * emb_dim:(f + 1) * emb_dim] for f in range(num_sparse)]

    # ---- over (top) arch layer 0, with the pairwise dot interactions fused
    # in as rank-1 updates.  Identical math to concat([d, pairs]) @ wo0 + bo0,
    # but with no in-kernel concat, no zero-pad, and no padded-K matmul. ----
    o = jnp.dot(d, wo0d_ref[...], preferred_element_type=jnp.float32) + bo0_ref[...]
    # TODO(synk): at production feature counts (F~27 -> 351 pairs) replace this
    # per-pair VPU loop with an MXU Gram matrix einsum('bfd,bgd->bfg') + a
    # precomputed upper-triangle gather emitting one (TB, num_pairs) array.
    p = 0
    for i in range(len(feats)):
        for j in range(i + 1, len(feats)):
            pij = jnp.sum((feats[i] * feats[j]).astype(jnp.float32),
                          axis=1, keepdims=True)              # (TB, 1) f32
            o = o + pij * wo0p_ref[p:p + 1, :].astype(jnp.float32)
            p += 1
    o = jnp.maximum(o, 0.0).astype(cdt)

    # ---- over arch layer 1: Linear + ReLU ----
    o = jnp.dot(o, wo1_ref[...], preferred_element_type=jnp.float32) + bo1_ref[...]
    o = jnp.maximum(o, 0.0)                                   # (TB, H) f32

    # ---- over arch final layer, in transposed (lane-dense) form ----
    # (1, H) @ (H, TB) -> (1, TB): full 128-lane-multiple store and only
    # 4 B/row of HBM output traffic (vs 512 B/row with the old 128-col pad).
    out_ref[...] = (jnp.dot(wo2t_ref[...].astype(jnp.float32), o.T,
                            preferred_element_type=jnp.float32)
                    + bo2_ref[...])                           # (1, TB) f32


# ----------------------------------------------------------------------------
# Wrapper: batch-tiled pallas_call
# ----------------------------------------------------------------------------
def dlrm_forward(dense_features, pooled_flat, params, *,
                 tile_b=1024, compute_dtype=jnp.bfloat16):
    """dense_features: (B, dense_in) f32.
    pooled_flat:     (B, F*emb_dim) f32, lane-concatenated pooled embeddings.
    params:          weights stored as (in, out); biases as (1, out) f32."""
    batch, dense_in = dense_features.shape
    fd = pooled_flat.shape[1]
    emb_dim = params["wd1"].shape[1]
    num_sparse = fd // emb_dim
    num_feats = num_sparse + 1
    num_pairs = num_feats * (num_feats - 1) // 2
    over_in = emb_dim + num_pairs
    assert params["wo0"].shape[0] == over_in
    assert params["wo2"].shape[1] == 1

    # Batch tile: multiple of 128 (lane-dense logit output), clamped so tiny
    # batches don't pay for a huge padded tile.
    # TODO(synk): on v7x prefer an even num_tiles so both TensorCores get equal
    # work under dimension_semantics=("parallel",).
    tile_b = max(LANE, min(_round_up(tile_b, LANE), _round_up(batch, LANE)))
    b_pad = _round_up(batch, tile_b)
    num_tiles = b_pad // tile_b

    cdt = compute_dtype
    dense_features = dense_features.astype(cdt)
    pooled_flat = pooled_flat.astype(cdt)
    if b_pad != batch:   # padded rows produce bias-only logits, sliced off below
        dense_features = jnp.pad(dense_features, ((0, b_pad - batch), (0, 0)))
        pooled_flat = jnp.pad(pooled_flat, ((0, b_pad - batch), (0, 0)))

    # Split wo0 into its dense rows and its pair rows (kernel never builds the
    # concatenated interaction vector) and transpose the width-1 final layer so
    # the kernel can emit lane-dense logits.
    wo0d = params["wo0"][:emb_dim]                 # (D, 128)
    wo0p = params["wo0"][emb_dim:]                 # (num_pairs, 128)
    wo2t = params["wo2"].T                         # (1, H2)
    weights = (params["wd0"].astype(cdt), params["bd0"],
               params["wd1"].astype(cdt), params["bd1"],
               wo0d.astype(cdt), wo0p.astype(cdt), params["bo0"],
               params["wo1"].astype(cdt), params["bo1"],
               wo2t.astype(cdt), params["bo2"])

    def tile_spec(ncols):
        # Per-tile activation block: new block each grid step -> double-buffered.
        return pl.BlockSpec((tile_b, ncols), lambda i: (i, 0))

    # NOTE: dense + pooled are kept as two inputs; merging them into one slab
    # would force either a non-lane-aligned in-kernel slice or extra padded
    # HBM bytes, for only one fewer DMA descriptor per step.
    in_specs = ([tile_spec(dense_in), tile_spec(fd)]
                + [_resident_spec(w.shape) for w in weights])

    out = pl.pallas_call(
        dlrm_kernel,
        out_shape=jax.ShapeDtypeStruct((1, b_pad), jnp.float32),
        grid=(num_tiles,),
        in_specs=in_specs,
        out_specs=pl.BlockSpec((1, tile_b), lambda i: (0, i)),
        compiler_params=pltpu.CompilerParams(
            dimension_semantics=("parallel",),          # batch tiles are independent
            vmem_limit_bytes=48 * 1024 * 1024),
    )(dense_features, pooled_flat, *weights)

    return out[0, :batch].reshape(batch, 1)               # (B, 1) logits, f32


# ----------------------------------------------------------------------------
# Plain-JAX glue: EmbeddingBagCollection (sum pooling over jagged indices),
# fused into the same jit as the Pallas kernel.
# ----------------------------------------------------------------------------
# TODO(synk): at production table sizes, fuse this gather into the kernel
# (PrefetchScalarGridSpec indices + tables in HBM via memory_space=pl.ANY +
# manual make_async_copy double-buffering) so row fetches overlap the MLP;
# when all lengths == 1 this is a pure gather (no scatter-add needed).
def embedding_bag_sum(table, values, lengths, batch_size):
    """Sum-pool embedding rows per sample (KeyedJaggedTensor semantics)."""
    seg_ids = jnp.repeat(jnp.arange(batch_size), lengths,
                         total_repeat_length=values.shape[0])
    return jax.ops.segment_sum(table[values], seg_ids, num_segments=batch_size)


@partial(jax.jit, static_argnames=("tile_b", "compute_dtype"))
def dlrm_predict(dense_features, sparse_values, sparse_lengths, tables, params,
                 tile_b=1024, compute_dtype=jnp.bfloat16):
    """Fused: embedding-bag pooling + batch-tiled DLRM Pallas kernel."""
    batch = dense_features.shape[0]
    pooled_flat = jnp.concatenate(
        [embedding_bag_sum(t, v, l, batch)
         for t, v, l in zip(tables, sparse_values, sparse_lengths)],
        axis=1)                                               # (B, F*emb_dim)
    return dlrm_forward(dense_features, pooled_flat, params,
                        tile_b=tile_b, compute_dtype=compute_dtype)


# ----------------------------------------------------------------------------
# Deterministic parameter init (PyTorch nn.Linear-style uniform bounds)
# ----------------------------------------------------------------------------
def init_linear(key, fan_in, fan_out):
    kw, kb = jax.random.split(key)
    bound = 1.0 / (fan_in ** 0.5)
    w = jax.random.uniform(kw, (fan_in, fan_out), jnp.float32, -bound, bound)
    b = jax.random.uniform(kb, (1, fan_out), jnp.float32, -bound, bound)
    return w, b


def reference_forward(dense_features, pooled_flat, params):
    """Pure-JAX f32 reference matching the PyTorch module, for validation."""
    h = jnp.maximum(dense_features @ params["wd0"] + params["bd0"], 0.0)
    d = jnp.maximum(h @ params["wd1"] + params["bd1"], 0.0)
    emb_dim = d.shape[1]
    num_sparse = pooled_flat.shape[1] // emb_dim
    feats = [d] + [pooled_flat[:, f * emb_dim:(f + 1) * emb_dim]
                   for f in range(num_sparse)]
    pairs = []
    for i in range(len(feats)):
        for j in range(i + 1, len(feats)):
            pairs.append(jnp.sum(feats[i] * feats[j], axis=1, keepdims=True))
    inter = jnp.concatenate([d] + pairs, axis=1)
    o = jnp.maximum(inter @ params["wo0"] + params["bo0"], 0.0)
    o = jnp.maximum(o @ params["wo1"] + params["bo1"], 0.0)
    return o @ params["wo2"] + params["bo2"]


if __name__ == "__main__":
    key = jax.random.PRNGKey(0)

    # Model hyper-parameters (module defaults / docstring example).
    BATCH = 200                       # not tile-aligned on purpose
    DENSE_IN = 4
    DENSE_LAYERS = [32, 64]           # dense_arch_layer_sizes
    OVER_LAYERS = [128, 64, 1]        # over_arch_layer_sizes
    EMB_DIM = 64
    TABLE_SIZES = {"user_id": 1000, "item_id": 500}

    keys = jax.random.split(key, 16)

    # Dense + over MLP parameters (stored as (in, out)).
    NUM_SPARSE = len(TABLE_SIZES)
    NUM_PAIRS = (NUM_SPARSE + 1) * NUM_SPARSE // 2            # 3
    OVER_IN = EMB_DIM + NUM_PAIRS                             # 67
    params = {}
    params["wd0"], params["bd0"] = init_linear(keys[0], DENSE_IN, DENSE_LAYERS[0])
    params["wd1"], params["bd1"] = init_linear(keys[1], DENSE_LAYERS[0], DENSE_LAYERS[1])
    params["wo0"], params["bo0"] = init_linear(keys[2], OVER_IN, OVER_LAYERS[0])
    params["wo1"], params["bo1"] = init_linear(keys[3], OVER_LAYERS[0], OVER_LAYERS[1])
    params["wo2"], params["bo2"] = init_linear(keys[4], OVER_LAYERS[1], OVER_LAYERS[2])

    # Embedding tables (EmbeddingBagCollection, sum pooling), feature order fixed.
    tables = (
        0.01 * jax.random.normal(keys[5], (TABLE_SIZES["user_id"], EMB_DIM), jnp.float32),
        0.01 * jax.random.normal(keys[6], (TABLE_SIZES["item_id"], EMB_DIM), jnp.float32),
    )

    # Inputs: dense features + KeyedJaggedTensor-style sparse features
    # (one index per sample per feature, lengths == 1, as in the docstring example).
    dense_features = jax.random.uniform(keys[7], (BATCH, DENSE_IN), jnp.float32)
    user_idx = jax.random.randint(keys[8], (BATCH,), 0, TABLE_SIZES["user_id"])
    item_idx = jax.random.randint(keys[9], (BATCH,), 0, TABLE_SIZES["item_id"])
    lengths = jnp.ones((BATCH,), jnp.int32)
    sparse_values = (user_idx, item_idx)
    sparse_lengths = (lengths, lengths)

    # Review correctness concern: jagged layout must be self-consistent.
    for v, l in zip(sparse_values, sparse_lengths):
        assert int(jnp.sum(l)) == v.shape[0], "sum(lengths) != len(values)"

    # Pure-JAX f32 reference of the PyTorch module.
    pooled_flat = jnp.concatenate(
        [embedding_bag_sum(t, v, l, BATCH)
         for t, v, l in zip(tables, sparse_values, sparse_lengths)], axis=1)
    ref = reference_forward(dense_features, pooled_flat, params)

    # 1) f32 kernel path with small tiles: tight check, exercises multi-tile grid.
    logits_f32 = dlrm_predict(dense_features, sparse_values, sparse_lengths,
                              tables, params, tile_b=128, compute_dtype=jnp.float32)
    logits_f32 = jax.block_until_ready(logits_f32)
    assert logits_f32.shape == (BATCH, 1)
    assert jnp.allclose(logits_f32, ref, atol=1e-4, rtol=1e-4), "f32 mismatch vs reference"

    # 2) Default production path (bf16 inputs/weights, f32 accumulation, big tile).
    logits = dlrm_predict(dense_features, sparse_values, sparse_lengths, tables, params)
    logits = jax.block_until_ready(logits)
    assert logits.shape == (BATCH, 1)
    assert jnp.allclose(logits, ref, atol=5e-2, rtol=5e-2), "bf16 mismatch vs reference"

    print("KERNEL_OK")
</pallas_src>

<mosaic_0001>
module attributes {stable_mosaic.version = 11 : i64} {
  func.func @dlrm_kernel(%arg0: i32, %arg1: memref<128x4xf32, #tpu.memory_space<vmem>>, %arg2: memref<128x128xf32, #tpu.memory_space<vmem>>, %arg3: memref<4x32xf32, #tpu.memory_space<vmem>>, %arg4: memref<1x32xf32, #tpu.memory_space<vmem>>, %arg5: memref<32x64xf32, #tpu.memory_space<vmem>>, %arg6: memref<1x64xf32, #tpu.memory_space<vmem>>, %arg7: memref<64x128xf32, #tpu.memory_space<vmem>>, %arg8: memref<3x128xf32, #tpu.memory_space<vmem>>, %arg9: memref<1x128xf32, #tpu.memory_space<vmem>>, %arg10: memref<128x64xf32, #tpu.memory_space<vmem>>, %arg11: memref<1x64xf32, #tpu.memory_space<vmem>>, %arg12: memref<1x64xf32, #tpu.memory_space<vmem>>, %arg13: memref<1x1xf32, #tpu.memory_space<vmem>>, %arg14: memref<1x128xf32, #tpu.memory_space<vmem>>) attributes {dimension_semantics = [#tpu.dimension_semantics<parallel>], iteration_bounds = array<i64: 2>, scalar_prefetch = 0 : i64, scratch_operands = 0 : i64, tpu.core_type = #tpu.core_type<tc>, window_params = [{transform_indices = @transform_0, window_bounds = array<i64: 128, 4>}, {transform_indices = @transform_1, window_bounds = array<i64: 128, 128>}, {pipeline_mode = #tpu.pipeline_mode<synchronous>, transform_indices = @transform_2, window_bounds = array<i64: 4, 32>}, {pipeline_mode = #tpu.pipeline_mode<synchronous>, transform_indices = @transform_3, window_bounds = array<i64: 1, 32>}, {pipeline_mode = #tpu.pipeline_mode<synchronous>, transform_indices = @transform_4, window_bounds = array<i64: 32, 64>}, {pipeline_mode = #tpu.pipeline_mode<synchronous>, transform_indices = @transform_5, window_bounds = array<i64: 1, 64>}, {pipeline_mode = #tpu.pipeline_mode<synchronous>, transform_indices = @transform_6, window_bounds = array<i64: 64, 128>}, {pipeline_mode = #tpu.pipeline_mode<synchronous>, transform_indices = @transform_7, window_bounds = array<i64: 3, 128>}, {pipeline_mode = #tpu.pipeline_mode<synchronous>, transform_indices = @transform_8, window_bounds = array<i64: 1, 128>}, {pipeline_mode = #tpu.pipeline_mode<synchronous>, transform_indices = @transform_9, window_bounds = array<i64: 128, 64>}, {pipeline_mode = #tpu.pipeline_mode<synchronous>, transform_indices = @transform_10, window_bounds = array<i64: 1, 64>}, {pipeline_mode = #tpu.pipeline_mode<synchronous>, transform_indices = @transform_11, window_bounds = array<i64: 1, 64>}, {pipeline_mode = #tpu.pipeline_mode<synchronous>, transform_indices = @transform_12, window_bounds = array<i64: 1, 1>}, {transform_indices = @transform_13, window_bounds = array<i64: 1, 128>}]} {
    %c0 = arith.constant 0 : index
    %c0_0 = arith.constant 0 : index
    %0 = vector.load %arg1[%c0, %c0_0] : memref<128x4xf32, #tpu.memory_space<vmem>>, vector<128x4xf32>
    %c0_1 = arith.constant 0 : index
    %c0_2 = arith.constant 0 : index
    %1 = vector.load %arg3[%c0_1, %c0_2] : memref<4x32xf32, #tpu.memory_space<vmem>>, vector<4x32xf32>
    %cst = arith.constant dense<0.000000e+00> : vector<128x32xf32>
    %2 = tpu.matmul %0, %1, %cst {dimension_numbers = #tpu.dot_dimension_numbers<[1], [0], [0], [1], [0, 0, 1, 1], [], []>} : vector<128x4xf32>, vector<4x32xf32>, vector<128x32xf32> -> vector<128x32xf32>
    %c0_3 = arith.constant 0 : index
    %c0_4 = arith.constant 0 : index
    %3 = vector.load %arg4[%c0_3, %c0_4] : memref<1x32xf32, #tpu.memory_space<vmem>>, vector<1x32xf32>
    %4 = vector.broadcast %3 : vector<1x32xf32> to vector<128x32xf32>
    %5 = arith.addf %2, %4 : vector<128x32xf32>
    %cst_5 = arith.constant 0.000000e+00 : f32
    %6 = vector.broadcast %cst_5 : f32 to vector<128x32xf32>
    %7 = arith.maximumf %5, %6 : vector<128x32xf32>
    %c0_6 = arith.constant 0 : index
    %c0_7 = arith.constant 0 : index
    %8 = vector.load %arg5[%c0_6, %c0_7] : memref<32x64xf32, #tpu.memory_space<vmem>>, vector<32x64xf32>
    %cst_8 = arith.constant dense<0.000000e+00> : vector<128x64xf32>
    %9 = tpu.matmul %7, %8, %cst_8 {dimension_numbers = #tpu.dot_dimension_numbers<[1], [0], [0], [1], [0, 0, 1, 1], [], []>} : vector<128x32xf32>, vector<32x64xf32>, vector<128x64xf32> -> vector<128x64xf32>
    %c0_9 = arith.constant 0 : index
    %c0_10 = arith.constant 0 : index
    %10 = vector.load %arg6[%c0_9, %c0_10] : memref<1x64xf32, #tpu.memory_space<vmem>>, vector<1x64xf32>
    %11 = vector.broadcast %10 : vector<1x64xf32> to vector<128x64xf32>
    %12 = arith.addf %9, %11 : vector<128x64xf32>
    %cst_11 = arith.constant 0.000000e+00 : f32
    %13 = vector.broadcast %cst_11 : f32 to vector<128x64xf32>
    %14 = arith.maximumf %12, %13 : vector<128x64xf32>
    %c0_12 = arith.constant 0 : index
    %c0_13 = arith.constant 0 : index
    %15 = vector.load %arg2[%c0_12, %c0_13] : memref<128x128xf32, #tpu.memory_space<vmem>>, vector<128x128xf32>
    %16 = vector.extract_strided_slice %15 {offsets = [0, 0], sizes = [128, 64], strides = [1, 1]} : vector<128x128xf32> to vector<128x64xf32>
    %17 = vector.extract_strided_slice %15 {offsets = [0, 64], sizes = [128, 64], strides = [1, 1]} : vector<128x128xf32> to vector<128x64xf32>
    %c0_14 = arith.constant 0 : index
    %c0_15 = arith.constant 0 : index
    %18 = vector.load %arg7[%c0_14, %c0_15] : memref<64x128xf32, #tpu.memory_space<vmem>>, vector<64x128xf32>
    %cst_16 = arith.constant dense<0.000000e+00> : vector<128x128xf32>
    %19 = tpu.matmul %14, %18, %cst_16 {dimension_numbers = #tpu.dot_dimension_numbers<[1], [0], [0], [1], [0, 0, 1, 1], [], []>} : vector<128x64xf32>, vector<64x128xf32>, vector<128x128xf32> -> vector<128x128xf32>
    %c0_17 = arith.constant 0 : index
    %c0_18 = arith.constant 0 : index
    %20 = vector.load %arg9[%c0_17, %c0_18] : memref<1x128xf32, #tpu.memory_space<vmem>>, vector<1x128xf32>
    %21 = vector.broadcast %20 : vector<1x128xf32> to vector<128x128xf32>
    %22 = arith.addf %19, %21 : vector<128x128xf32>
    %23 = arith.mulf %14, %16 : vector<128x64xf32>
    %cst_19 = arith.constant dense<0.000000e+00> : vector<128xf32>
    %24 = vector.multi_reduction <add>, %23, %cst_19 [1] : vector<128x64xf32> to vector<128xf32>
    %25 = vector.shape_cast %24 : vector<128xf32> to vector<128x1xf32>
    %c0_20 = arith.constant 0 : index
    %c0_21 = arith.constant 0 : index
    %26 = vector.load %arg8[%c0_20, %c0_21] : memref<3x128xf32, #tpu.memory_space<vmem>>, vector<1x128xf32>
    %27 = vector.broadcast %25 : vector<128x1xf32> to vector<128x128xf32>
    %28 = vector.broadcast %26 : vector<1x128xf32> to vector<128x128xf32>
    %29 = arith.mulf %27, %28 : vector<128x128xf32>
    %30 = arith.addf %22, %29 : vector<128x128xf32>
    %31 = arith.mulf %14, %17 : vector<128x64xf32>
    %cst_22 = arith.constant dense<0.000000e+00> : vector<128xf32>
    %32 = vector.multi_reduction <add>, %31, %cst_22 [1] : vector<128x64xf32> to vector<128xf32>
    %33 = vector.shape_cast %32 : vector<128xf32> to vector<128x1xf32>
    %c1 = arith.constant 1 : index
    %c0_23 = arith.constant 0 : index
    %34 = vector.load %arg8[%c1, %c0_23] : memref<3x128xf32, #tpu.memory_space<vmem>>, vector<1x128xf32>
    %35 = vector.broadcast %33 : vector<128x1xf32> to vector<128x128xf32>
    %36 = vector.broadcast %34 : vector<1x128xf32> to vector<128x128xf32>
    %37 = arith.mulf %35, %36 : vector<128x128xf32>
    %38 = arith.addf %30, %37 : vector<128x128xf32>
    %39 = arith.mulf %16, %17 : vector<128x64xf32>
    %cst_24 = arith.constant dense<0.000000e+00> : vector<128xf32>
    %40 = vector.multi_reduction <add>, %39, %cst_24 [1] : vector<128x64xf32> to vector<128xf32>
    %41 = vector.shape_cast %40 : vector<128xf32> to vector<128x1xf32>
    %c2 = arith.constant 2 : index
    %c0_25 = arith.constant 0 : index
    %42 = vector.load %arg8[%c2, %c0_25] : memref<3x128xf32, #tpu.memory_space<vmem>>, vector<1x128xf32>
    %43 = vector.broadcast %41 : vector<128x1xf32> to vector<128x128xf32>
    %44 = vector.broadcast %42 : vector<1x128xf32> to vector<128x128xf32>
    %45 = arith.mulf %43, %44 : vector<128x128xf32>
    %46 = arith.addf %38, %45 : vector<128x128xf32>
    %cst_26 = arith.constant 0.000000e+00 : f32
    %47 = vector.broadcast %cst_26 : f32 to vector<128x128xf32>
    %48 = arith.maximumf %46, %47 : vector<128x128xf32>
    %c0_27 = arith.constant 0 : index
    %c0_28 = arith.constant 0 : index
    %49 = vector.load %arg10[%c0_27, %c0_28] : memref<128x64xf32, #tpu.memory_space<vmem>>, vector<128x64xf32>
    %cst_29 = arith.constant dense<0.000000e+00> : vector<128x64xf32>
    %50 = tpu.matmul %48, %49, %cst_29 {dimension_numbers = #tpu.dot_dimension_numbers<[1], [0], [0], [1], [0, 0, 1, 1], [], []>} : vector<128x128xf32>, vector<128x64xf32>, vector<128x64xf32> -> vector<128x64xf32>
    %c0_30 = arith.constant 0 : index
    %c0_31 = arith.constant 0 : index
    %51 = vector.load %arg11[%c0_30, %c0_31] : memref<1x64xf32, #tpu.memory_space<vmem>>, vector<1x64xf32>
    %52 = vector.broadcast %51 : vector<1x64xf32> to vector<128x64xf32>
    %53 = arith.addf %50, %52 : vector<128x64xf32>
    %cst_32 = arith.constant 0.000000e+00 : f32
    %54 = vector.broadcast %cst_32 : f32 to vector<128x64xf32>
    %55 = arith.maximumf %53, %54 : vector<128x64xf32>
    %c0_33 = arith.constant 0 : index
    %c0_34 = arith.constant 0 : index
    %56 = vector.load %arg12[%c0_33, %c0_34] : memref<1x64xf32, #tpu.memory_space<vmem>>, vector<1x64xf32>
    %57 = tpu.transpose %55, [1, 0] : vector<128x64xf32> -> vector<64x128xf32>
    %cst_35 = arith.constant dense<0.000000e+00> : vector<1x128xf32>
    %58 = tpu.matmul %56, %57, %cst_35 {dimension_numbers = #tpu.dot_dimension_numbers<[1], [0], [0], [1], [0, 0, 1, 1], [], []>} : vector<1x64xf32>, vector<64x128xf32>, vector<1x128xf32> -> vector<1x128xf32>
    %c0_36 = arith.constant 0 : index
    %c0_37 = arith.constant 0 : index
    %59 = vector.load %arg13[%c0_36, %c0_37] : memref<1x1xf32, #tpu.memory_space<vmem>>, vector<1x1xf32>
    %60 = vector.broadcast %59 : vector<1x1xf32> to vector<1x128xf32>
    %61 = arith.addf %58, %60 : vector<1x128xf32>
    %c0_38 = arith.constant 0 : index
    %c0_39 = arith.constant 0 : index
    %62 = vector.load %arg14[%c0_38, %c0_39] : memref<1x128xf32, #tpu.memory_space<vmem>>, vector<1x128xf32>
    tpu.vector_store %arg14[%c0_38, %c0_39], %61 {strides = array<i32>} : memref<1x128xf32, #tpu.memory_space<vmem>>, vector<1x128xf32>,
    return
  }
  func.func @transform_0(%arg0: i32) -> (i32, i32) {
    %c0_i32 = arith.constant 0 : i32
    %c0_i32_0 = arith.constant 0 : i32
    return %arg0, %c0_i32 : i32, i32
  }
  func.func @transform_1(%arg0: i32) -> (i32, i32) {
    %c0_i32 = arith.constant 0 : i32
    %c0_i32_0 = arith.constant 0 : i32
    return %arg0, %c0_i32 : i32, i32
  }
  func.func @transform_2(%arg0: i32) -> (i32, i32) {
    %c0_i32 = arith.constant 0 : i32
    %c0_i32_0 = arith.constant 0 : i32
    %c0_i32_1 = arith.constant 0 : i32
    return %c0_i32, %c0_i32_0 : i32, i32
  }
  func.func @transform_3(%arg0: i32) -> (i32, i32) {
    %c0_i32 = arith.constant 0 : i32
    %c0_i32_0 = arith.constant 0 : i32
    %c0_i32_1 = arith.constant 0 : i32
    return %c0_i32, %c0_i32_0 : i32, i32
  }
  func.func @transform_4(%arg0: i32) -> (i32, i32) {
    %c0_i32 = arith.constant 0 : i32
    %c0_i32_0 = arith.constant 0 : i32
    %c0_i32_1 = arith.constant 0 : i32
    return %c0_i32, %c0_i32_0 : i32, i32
  }
  func.func @transform_5(%arg0: i32) -> (i32, i32) {
    %c0_i32 = arith.constant 0 : i32
    %c0_i32_0 = arith.constant 0 : i32
    %c0_i32_1 = arith.constant 0 : i32
    return %c0_i32, %c0_i32_0 : i32, i32
  }
  func.func @transform_6(%arg0: i32) -> (i32, i32) {
    %c0_i32 = arith.constant 0 : i32
    %c0_i32_0 = arith.constant 0 : i32
    %c0_i32_1 = arith.constant 0 : i32
    return %c0_i32, %c0_i32_0 : i32, i32
  }
  func.func @transform_7(%arg0: i32) -> (i32, i32) {
    %c0_i32 = arith.constant 0 : i32
    %c0_i32_0 = arith.constant 0 : i32
    %c0_i32_1 = arith.constant 0 : i32
    return %c0_i32, %c0_i32_0 : i32, i32
  }
  func.func @transform_8(%arg0: i32) -> (i32, i32) {
    %c0_i32 = arith.constant 0 : i32
    %c0_i32_0 = arith.constant 0 : i32
    %c0_i32_1 = arith.constant 0 : i32
    return %c0_i32, %c0_i32_0 : i32, i32
  }
  func.func @transform_9(%arg0: i32) -> (i32, i32) {
    %c0_i32 = arith.constant 0 : i32
    %c0_i32_0 = arith.constant 0 : i32
    %c0_i32_1 = arith.constant 0 : i32
    return %c0_i32, %c0_i32_0 : i32, i32
  }
  func.func @transform_10(%arg0: i32) -> (i32, i32) {
    %c0_i32 = arith.constant 0 : i32
    %c0_i32_0 = arith.constant 0 : i32
    %c0_i32_1 = arith.constant 0 : i32
    return %c0_i32, %c0_i32_0 : i32, i32
  }
  func.func @transform_11(%arg0: i32) -> (i32, i32) {
    %c0_i32 = arith.constant 0 : i32
    %c0_i32_0 = arith.constant 0 : i32
    %c0_i32_1 = arith.constant 0 : i32
    return %c0_i32, %c0_i32_0 : i32, i32
  }
  func.func @transform_12(%arg0: i32) -> (i32, i32) {
    %c0_i32 = arith.constant 0 : i32
    %c0_i32_0 = arith.constant 0 : i32
    %c0_i32_1 = arith.constant 0 : i32
    return %c0_i32, %c0_i32_0 : i32, i32
  }
  func.func @transform_13(%arg0: i32) -> (i32, i32) {
    %c0_i32 = arith.constant 0 : i32
    %c0_i32_0 = arith.constant 0 : i32
    return %c0_i32, %arg0 : i32, i32
  }
}

</mosaic_0001>

<llo_original>
// kernel: dlrm_predict.1
$region0: #{dlrm_predict.1}
  #allocation0 [shape = 'u32[]', space=smem, size = 0x4, offset = 0x4, fixed_abs, tag = 'smem constant byte address 0x4 - core index']
  #allocation1 [shape = 'u32[144,128]{1,0:T(1,128)}', space=vmem, size = 0x12000, scoped, tag = 'internal scratch']
  #allocation2 [shape = 'f32[1,1]{1,0:T(1,128)S(1)}', space=vmem, size = 0x200, scoped, tag = 'scoped memory for dlrm_predict.1']
  %s0 = inlined_call_operand.vmem [shape: f32[256,4], index: 0, kind: input, shape index: {}]
  %s1 = inlined_call_operand.vmem [shape: f32[256,128], index: 1, kind: input, shape index: {}]
  %s2 = inlined_call_operand.vmem [shape: f32[4,32], index: 2, kind: input, shape index: {}]
  %s3 = inlined_call_operand.vmem [shape: f32[1,32], index: 3, kind: input, shape index: {}]
  %s4 = inlined_call_operand.vmem [shape: f32[32,64], index: 4, kind: input, shape index: {}]
  %s5 = inlined_call_operand.vmem [shape: f32[1,64], index: 5, kind: input, shape index: {}]
  %s6 = inlined_call_operand.vmem [shape: f32[64,128], index: 6, kind: input, shape index: {}]
  %s7 = inlined_call_operand.vmem [shape: f32[3,128], index: 7, kind: input, shape index: {}]
  %s8 = inlined_call_operand.vmem [shape: f32[1,128], index: 8, kind: input, shape index: {}]
  %s9 = inlined_call_operand.vmem [shape: f32[128,64], index: 9, kind: input, shape index: {}]
  %s10 = inlined_call_operand.vmem [shape: f32[1,64], index: 10, kind: input, shape index: {}]
  %s11 = inlined_call_operand.vmem [shape: f32[1,64], index: 11, kind: input, shape index: {}]
  %s12 = inlined_call_operand.<no memory space> [shape: f32[1,1], index: 12, kind: input, shape index: {}]
  %s13 = inlined_call_operand.vmem [shape: f32[1,256], index: 13, kind: output, shape index: {}]
  %s14 = sld [smem:[#allocation0]]
  $region85: #{dlrm_predict.1} parent=0
    _
  %s16 = ssub.s32 1, %s14
  %s17 = scalar_select 0, %s16, %s14
  %v18 = vstv %s12
  %19 = vst [vmem:[#allocation2] sm:$0x1] %v18
  loop: start=0, step=1, limit=4
  $region2: #{dlrm_predict.1} parent=0 // loop_pre_header
    _
  $region3: #{dlrm_predict.1} parent=0 // loop_header
    %s21 = sphi 0, %s25
    %p22 = scmp.ge.s32.totalorder %s21, 4
    %s31 = sphi 0, %s33
    %s34 = sphi 0, %s31
    %s35 = sphi 0, %s34
    %s51 = sphi 0, %s35
    %s57 = sphi 0, %s59
    %s60 = sphi 0, %s57
    %s61 = sphi 0, %s60
    %s77 = sphi 0, %s61
    %s81 = sphi 0, %s81
    %s83 = sphi 0, %s81
    %s84 = sphi 0, %s83
    %s98 = sphi 0, %s84
    %s102 = sphi 0, %s102
    %s104 = sphi 0, %s102
    %s105 = sphi 0, %s104
    %s119 = sphi 0, %s105
    %s123 = sphi 0, %s123
    %s125 = sphi 0, %s123
    %s126 = sphi 0, %s125
    %s140 = sphi 0, %s126
    %s144 = sphi 0, %s144
    %s146 = sphi 0, %s144
    %s147 = sphi 0, %s146
    %s161 = sphi 0, %s147
    %s165 = sphi 0, %s165
    %s167 = sphi 0, %s165
    %s168 = sphi 0, %s167
    %s182 = sphi 0, %s168
    %s186 = sphi 0, %s186
    %s188 = sphi 0, %s186
    %s189 = sphi 0, %s188
    %s203 = sphi 0, %s189
    %s207 = sphi 0, %s207
    %s209 = sphi 0, %s207
    %s210 = sphi 0, %s209
    %s224 = sphi 0, %s210
    %s228 = sphi 0, %s228
    %s230 = sphi 0, %s228
    %s231 = sphi 0, %s230
    %s245 = sphi 0, %s231
    %s249 = sphi 0, %s249
    %s251 = sphi 0, %s249
    %s252 = sphi 0, %s251
    %s266 = sphi 0, %s252
    %s270 = sphi 0, %s270
    %s272 = sphi 0, %s270
    %s273 = sphi 0, %s272
    %s287 = sphi 0, %s273
    %s291 = sphi 0, %s291
    %s293 = sphi 0, %s291
    %s294 = sphi 0, %s293
    %s308 = sphi 0, %s294
    %s314 = sphi 0, %s316
    %s317 = sphi 0, %s314
    %s318 = sphi 0, %s317
    %s334 = sphi 0, %s318
  $region4: #{dlrm_predict.1} parent=0 // loop_header_branch
    %24 = sbr.rel (%p22) target = $region8
  $region5: #{dlrm_predict.1} parent=0 // loop_body
    %s26 = ssub.s32 %s21, 1
    %s27 = ssub.s32 %s21, 2
    %s28 = sadd.s32 %s21, 1
    %s29 = ssub.s32 %s21, %s28
    %p30 = scmp.eq.s32.totalorder %s29, 0
    %s32 = sadd.s32 %s31, 1
    %s33 = scalar_select %p30, %s31, %s32
    %p36 = pneg %p30
    %p37 = scmp.eq.s32.totalorder %s21, 1
    %p38 = por %p36, %p37
    %p39 = scmp.ne.s32.totalorder %s31, %s34
    %p40 = scmp.eq.s32.totalorder %s21, 0
    %p41 = por %p39, %p40
    %p42 = scmp.ne.s32.totalorder %s31, %s34
    %p43 = scmp.eq.s32.totalorder %s26, 1
    %p44 = por %p42, %p43
    %p45 = scmp.ne.s32.totalorder %s34, %s35
    %p46 = scmp.eq.s32.totalorder %s26, 0
    %p47 = por %p45, %p46
    %p48 = scmp.ne.s32.totalorder %s34, %s35
    %p49 = scmp.eq.s32.totalorder %s27, 1
    %p50 = por %p48, %p49
    %p52 = scmp.ne.s32.totalorder %s35, %s51
    %p53 = scmp.eq.s32.totalorder %s27, 0
    %p54 = por %p52, %p53
    %s55 = ssub.s32 %s21, %s28
    %p56 = scmp.eq.s32.totalorder %s55, 0
    %s58 = sadd.s32 %s57, 1
    %s59 = scalar_select %p56, %s57, %s58
    %p62 = pneg %p56
    %p63 = scmp.eq.s32.totalorder %s21, 1
    %p64 = por %p62, %p63
    %p65 = scmp.ne.s32.totalorder %s57, %s60
    %p66 = scmp.eq.s32.totalorder %s21, 0
    %p67 = por %p65, %p66
    %p68 = scmp.ne.s32.totalorder %s57, %s60
    %p69 = scmp.eq.s32.totalorder %s26, 1
    %p70 = por %p68, %p69
    %p71 = scmp.ne.s32.totalorder %s60, %s61
    %p72 = scmp.eq.s32.totalorder %s26, 0
    %p73 = por %p71, %p72
    %p74 = scmp.ne.s32.totalorder %s60, %s61
    %p75 = scmp.eq.s32.totalorder %s27, 1
    %p76 = por %p74, %p75
    %p78 = scmp.ne.s32.totalorder %s61, %s77
    %p79 = scmp.eq.s32.totalorder %s27, 0
    %p80 = por %p78, %p79
    %s82 = sadd.s32 %s81, 1
    %p85 = scmp.eq.s32.totalorder %s21, 1
    %p86 = scmp.ne.s32.totalorder %s81, %s83
    %p87 = scmp.eq.s32.totalorder %s21, 0
    %p88 = por %p86, %p87
    %p89 = scmp.ne.s32.totalorder %s81, %s83
    %p90 = scmp.eq.s32.totalorder %s26, 1
    %p91 = por %p89, %p90
    %p92 = scmp.ne.s32.totalorder %s83, %s84
    %p93 = scmp.eq.s32.totalorder %s26, 0
    %p94 = por %p92, %p93
    %p95 = scmp.ne.s32.totalorder %s83, %s84
    %p96 = scmp.eq.s32.totalorder %s27, 1
    %p97 = por %p95, %p96
    %p99 = scmp.ne.s32.totalorder %s84, %s98
    %p100 = scmp.eq.s32.totalorder %s27, 0
    %p101 = por %p99, %p100
    %s103 = sadd.s32 %s102, 1
    %p106 = scmp.eq.s32.totalorder %s21, 1
    %p107 = scmp.ne.s32.totalorder %s102, %s104
    %p108 = scmp.eq.s32.totalorder %s21, 0
    %p109 = por %p107, %p108
    %p110 = scmp.ne.s32.totalorder %s102, %s104
    %p111 = scmp.eq.s32.totalorder %s26, 1
    %p112 = por %p110, %p111
    %p113 = scmp.ne.s32.totalorder %s104, %s105
    %p114 = scmp.eq.s32.totalorder %s26, 0
    %p115 = por %p113, %p114
    %p116 = scmp.ne.s32.totalorder %s104, %s105
    %p117 = scmp.eq.s32.totalorder %s27, 1
    %p118 = por %p116, %p117
    %p120 = scmp.ne.s32.totalorder %s105, %s119
    %p121 = scmp.eq.s32.totalorder %s27, 0
    %p122 = por %p120, %p121
    %s124 = sadd.s32 %s123, 1
    %p127 = scmp.eq.s32.totalorder %s21, 1
    %p128 = scmp.ne.s32.totalorder %s123, %s125
    %p129 = scmp.eq.s32.totalorder %s21, 0
    %p130 = por %p128, %p129
    %p131 = scmp.ne.s32.totalorder %s123, %s125
    %p132 = scmp.eq.s32.totalorder %s26, 1
    %p133 = por %p131, %p132
    %p134 = scmp.ne.s32.totalorder %s125, %s126
    %p135 = scmp.eq.s32.totalorder %s26, 0
    %p136 = por %p134, %p135
    %p137 = scmp.ne.s32.totalorder %s125, %s126
    %p138 = scmp.eq.s32.totalorder %s27, 1
    %p139 = por %p137, %p138
    %p141 = scmp.ne.s32.totalorder %s126, %s140
    %p142 = scmp.eq.s32.totalorder %s27, 0
    %p143 = por %p141, %p142
    %s145 = sadd.s32 %s144, 1
    %p148 = scmp.eq.s32.totalorder %s21, 1
    %p149 = scmp.ne.s32.totalorder %s144, %s146
    %p150 = scmp.eq.s32.totalorder %s21, 0
    %p151 = por %p149, %p150
    %p152 = scmp.ne.s32.totalorder %s144, %s146
    %p153 = scmp.eq.s32.totalorder %s26, 1
    %p154 = por %p152, %p153
    %p155 = scmp.ne.s32.totalorder %s146, %s147
    %p156 = scmp.eq.s32.totalorder %s26, 0
    %p157 = por %p155, %p156
    %p158 = scmp.ne.s32.totalorder %s146, %s147
    %p159 = scmp.eq.s32.totalorder %s27, 1
    %p160 = por %p158, %p159
    %p162 = scmp.ne.s32.totalorder %s147, %s161
    %p163 = scmp.eq.s32.totalorder %s27, 0
    %p164 = por %p162, %p163
    %s166 = sadd.s32 %s165, 1
    %p169 = scmp.eq.s32.totalorder %s21, 1
    %p170 = scmp.ne.s32.totalorder %s165, %s167
    %p171 = scmp.eq.s32.totalorder %s21, 0
    %p172 = por %p170, %p171
    %p173 = scmp.ne.s32.totalorder %s165, %s167
    %p174 = scmp.eq.s32.totalorder %s26, 1
    %p175 = por %p173, %p174
    %p176 = scmp.ne.s32.totalorder %s167, %s168
    %p177 = scmp.eq.s32.totalorder %s26, 0
    %p178 = por %p176, %p177
    %p179 = scmp.ne.s32.totalorder %s167, %s168
    %p180 = scmp.eq.s32.totalorder %s27, 1
    %p181 = por %p179, %p180
    %p183 = scmp.ne.s32.totalorder %s168, %s182
    %p184 = scmp.eq.s32.totalorder %s27, 0
    %p185 = por %p183, %p184
    %s187 = sadd.s32 %s186, 1
    %p190 = scmp.eq.s32.totalorder %s21, 1
    %p191 = scmp.ne.s32.totalorder %s186, %s188
    %p192 = scmp.eq.s32.totalorder %s21, 0
    %p193 = por %p191, %p192
    %p194 = scmp.ne.s32.totalorder %s186, %s188
    %p195 = scmp.eq.s32.totalorder %s26, 1
    %p196 = por %p194, %p195
    %p197 = scmp.ne.s32.totalorder %s188, %s189
    %p198 = scmp.eq.s32.totalorder %s26, 0
    %p199 = por %p197, %p198
    %p200 = scmp.ne.s32.totalorder %s188, %s189
    %p201 = scmp.eq.s32.totalorder %s27, 1
    %p202 = por %p200, %p201
    %p204 = scmp.ne.s32.totalorder %s189, %s203
    %p205 = scmp.eq.s32.totalorder %s27, 0
    %p206 = por %p204, %p205
    %s208 = sadd.s32 %s207, 1
    %p211 = scmp.eq.s32.totalorder %s21, 1
    %p212 = scmp.ne.s32.totalorder %s207, %s209
    %p213 = scmp.eq.s32.totalorder %s21, 0
    %p214 = por %p212, %p213
    %p215 = scmp.ne.s32.totalorder %s207, %s209
    %p216 = scmp.eq.s32.totalorder %s26, 1
    %p217 = por %p215, %p216
    %p218 = scmp.ne.s32.totalorder %s209, %s210
    %p219 = scmp.eq.s32.totalorder %s26, 0
    %p220 = por %p218, %p219
    %p221 = scmp.ne.s32.totalorder %s209, %s210
    %p222 = scmp.eq.s32.totalorder %s27, 1
    %p223 = por %p221, %p222
    %p225 = scmp.ne.s32.totalorder %s210, %s224
    %p226 = scmp.eq.s32.totalorder %s27, 0
    %p227 = por %p225, %p226
    %s229 = sadd.s32 %s228, 1
    %p232 = scmp.eq.s32.totalorder %s21, 1
    %p233 = scmp.ne.s32.totalorder %s228, %s230
    %p234 = scmp.eq.s32.totalorder %s21, 0
    %p235 = por %p233, %p234
    %p236 = scmp.ne.s32.totalorder %s228, %s230
    %p237 = scmp.eq.s32.totalorder %s26, 1
    %p238 = por %p236, %p237
    %p239 = scmp.ne.s32.totalorder %s230, %s231
    %p240 = scmp.eq.s32.totalorder %s26, 0
    %p241 = por %p239, %p240
    %p242 = scmp.ne.s32.totalorder %s230, %s231
    %p243 = scmp.eq.s32.totalorder %s27, 1
    %p244 = por %p242, %p243
    %p246 = scmp.ne.s32.totalorder %s231, %s245
    %p247 = scmp.eq.s32.totalorder %s27, 0
    %p248 = por %p246, %p247
    %s250 = sadd.s32 %s249, 1
    %p253 = scmp.eq.s32.totalorder %s21, 1
    %p254 = scmp.ne.s32.totalorder %s249, %s251
    %p255 = scmp.eq.s32.totalorder %s21, 0
    %p256 = por %p254, %p255
    %p257 = scmp.ne.s32.totalorder %s249, %s251
    %p258 = scmp.eq.s32.totalorder %s26, 1
    %p259 = por %p257, %p258
    %p260 = scmp.ne.s32.totalorder %s251, %s252
    %p261 = scmp.eq.s32.totalorder %s26, 0
    %p262 = por %p260, %p261
    %p263 = scmp.ne.s32.totalorder %s251, %s252
    %p264 = scmp.eq.s32.totalorder %s27, 1
    %p265 = por %p263, %p264
    %p267 = scmp.ne.s32.totalorder %s252, %s266
    %p268 = scmp.eq.s32.totalorder %s27, 0
    %p269 = por %p267, %p268
    %s271 = sadd.s32 %s270, 1
    %p274 = scmp.eq.s32.totalorder %s21, 1
    %p275 = scmp.ne.s32.totalorder %s270, %s272
    %p276 = scmp.eq.s32.totalorder %s21, 0
    %p277 = por %p275, %p276
    %p278 = scmp.ne.s32.totalorder %s270, %s272
    %p279 = scmp.eq.s32.totalorder %s26, 1
    %p280 = por %p278, %p279
    %p281 = scmp.ne.s32.totalorder %s272, %s273
    %p282 = scmp.eq.s32.totalorder %s26, 0
    %p283 = por %p281, %p282
    %p284 = scmp.ne.s32.totalorder %s272, %s273
    %p285 = scmp.eq.s32.totalorder %s27, 1
    %p286 = por %p284, %p285
    %p288 = scmp.ne.s32.totalorder %s273, %s287
    %p289 = scmp.eq.s32.totalorder %s27, 0
    %p290 = por %p288, %p289
    %s292 = sadd.s32 %s291, 1
    %p295 = scmp.eq.s32.totalorder %s21, 1
    %p296 = scmp.ne.s32.totalorder %s291, %s293
    %p297 = scmp.eq.s32.totalorder %s21, 0
    %p298 = por %p296, %p297
    %p299 = scmp.ne.s32.totalorder %s291, %s293
    %p300 = scmp.eq.s32.totalorder %s26, 1
    %p301 = por %p299, %p300
    %p302 = scmp.ne.s32.totalorder %s293, %s294
    %p303 = scmp.eq.s32.totalorder %s26, 0
    %p304 = por %p302, %p303
    %p305 = scmp.ne.s32.totalorder %s293, %s294
    %p306 = scmp.eq.s32.totalorder %s27, 1
    %p307 = por %p305, %p306
    %p309 = scmp.ne.s32.totalorder %s294, %s308
    %p310 = scmp.eq.s32.totalorder %s27, 0
    %p311 = por %p309, %p310
    %s312 = ssub.s32 %s21, %s28
    %p313 = scmp.eq.s32.totalorder %s312, 0
    %s315 = sadd.s32 %s314, 1
    %s316 = scalar_select %p313, %s314, %s315
    %p319 = pneg %p313
    %p320 = scmp.eq.s32.totalorder %s21, 1
    %p321 = por %p319, %p320
    %p322 = scmp.ne.s32.totalorder %s314, %s317
    %p323 = scmp.eq.s32.totalorder %s21, 0
    %p324 = por %p322, %p323
    %p325 = scmp.ne.s32.totalorder %s314, %s317
    %p326 = scmp.eq.s32.totalorder %s26, 1
    %p327 = por %p325, %p326
    %p328 = scmp.ne.s32.totalorder %s317, %s318
    %p329 = scmp.eq.s32.totalorder %s26, 0
    %p330 = por %p328, %p329
    %p331 = scmp.ne.s32.totalorder %s317, %s318
    %p332 = scmp.eq.s32.totalorder %s27, 1
    %p333 = por %p331, %p332
    %p335 = scmp.ne.s32.totalorder %s318, %s334
    %p336 = scmp.eq.s32.totalorder %s27, 0
    %p337 = por %p335, %p336
    %p338 = scmp.le.s32.totalorder 1, %s21
    %p339 = scmp.lt.s32.totalorder %s21, 3
    %p340 = pnand %p338, %p339
    %p341 = pneg %p340
    // Predicated region
    $region9: #{dlrm_predict.1} parent=5 // pred_check
      _
    $region10: #{dlrm_predict.1} parent=5 // pred_check_branch
      %343 = sbr.rel (%p340) target = $region12
    $region11: #{dlrm_predict.1} parent=5 // pred_region
      %s344 = ssub.s32 %s21, 1
      // Predicated region
      $region13: #{dlrm_predict.1} parent=11 // pred_check
        %p345 = pneg %p94
      $region14: #{dlrm_predict.1} parent=11 // pred_check_branch
        %347 = sbr.rel (%p345) target = $region16
      $region15: #{dlrm_predict.1} parent=11 // pred_region
        _
      $region16: #{dlrm_predict.1} parent=11 // pred_fallthru
        _
      // Predicated region
      $region17: #{dlrm_predict.1} parent=11 // pred_check
        %p348 = pneg %p115
      $region18: #{dlrm_predict.1} parent=11 // pred_check_branch
        %350 = sbr.rel (%p348) target = $region20
      $region19: #{dlrm_predict.1} parent=11 // pred_region
        _
      $region20: #{dlrm_predict.1} parent=11 // pred_fallthru
        _
      // Predicated region
      $region21: #{dlrm_predict.1} parent=11 // pred_check
        %p351 = pneg %p136
      $region22: #{dlrm_predict.1} parent=11 // pred_check_branch
        %353 = sbr.rel (%p351) target = $region24
      $region23: #{dlrm_predict.1} parent=11 // pred_region
        _
      $region24: #{dlrm_predict.1} parent=11 // pred_fallthru
        _
      // Predicated region
      $region25: #{dlrm_predict.1} parent=11 // pred_check
        %p354 = pneg %p157
      $region26: #{dlrm_predict.1} parent=11 // pred_check_branch
        %356 = sbr.rel (%p354) target = $region28
      $region27: #{dlrm_predict.1} parent=11 // pred_region
        _
      $region28: #{dlrm_predict.1} parent=11 // pred_fallthru
        _
      // Predicated region
      $region29: #{dlrm_predict.1} parent=11 // pred_check
        %p357 = pneg %p178
      $region30: #{dlrm_predict.1} parent=11 // pred_check_branch
        %359 = sbr.rel (%p357) target = $region32
      $region31: #{dlrm_predict.1} parent=11 // pred_region
        _
      $region32: #{dlrm_predict.1} parent=11 // pred_fallthru
        _
      // Predicated region
      $region33: #{dlrm_predict.1} parent=11 // pred_check
        %p360 = pneg %p199
      $region34: #{dlrm_predict.1} parent=11 // pred_check_branch
        %362 = sbr.rel (%p360) target = $region36
      $region35: #{dlrm_predict.1} parent=11 // pred_region
        _
      $region36: #{dlrm_predict.1} parent=11 // pred_fallthru
        _
      // Predicated region
      $region37: #{dlrm_predict.1} parent=11 // pred_check
        %p363 = pneg %p220
      $region38: #{dlrm_predict.1} parent=11 // pred_check_branch
        %365 = sbr.rel (%p363) target = $region40
      $region39: #{dlrm_predict.1} parent=11 // pred_region
        _
      $region40: #{dlrm_predict.1} parent=11 // pred_fallthru
        _
      // Predicated region
      $region41: #{dlrm_predict.1} parent=11 // pred_check
        %p366 = pneg %p241
      $region42: #{dlrm_predict.1} parent=11 // pred_check_branch
        %368 = sbr.rel (%p366) target = $region44
      $region43: #{dlrm_predict.1} parent=11 // pred_region
        _
      $region44: #{dlrm_predict.1} parent=11 // pred_fallthru
        _
      // Predicated region
      $region45: #{dlrm_predict.1} parent=11 // pred_check
        %p369 = pneg %p262
      $region46: #{dlrm_predict.1} parent=11 // pred_check_branch
        %371 = sbr.rel (%p369) target = $region48
      $region47: #{dlrm_predict.1} parent=11 // pred_region
        _
      $region48: #{dlrm_predict.1} parent=11 // pred_fallthru
        _
      // Predicated region
      $region49: #{dlrm_predict.1} parent=11 // pred_check
        %p372 = pneg %p283
      $region50: #{dlrm_predict.1} parent=11 // pred_check_branch
        %374 = sbr.rel (%p372) target = $region52
      $region51: #{dlrm_predict.1} parent=11 // pred_region
        _
      $region52: #{dlrm_predict.1} parent=11 // pred_fallthru
        _
      // Predicated region
      $region53: #{dlrm_predict.1} parent=11 // pred_check
        %p375 = pneg %p304
      $region54: #{dlrm_predict.1} parent=11 // pred_check_branch
        %377 = sbr.rel (%p375) target = $region56
      $region55: #{dlrm_predict.1} parent=11 // pred_region
        _
      $region56: #{dlrm_predict.1} parent=11 // pred_fallthru
        _
    $region12: #{dlrm_predict.1} parent=5 // pred_fallthru
      _
    %p378 = scmp.lt.s32.totalorder %s21, 2
    // Predicated region
    $region57: #{dlrm_predict.1} parent=5 // pred_check
      %p379 = pneg %p378
    $region58: #{dlrm_predict.1} parent=5 // pred_check_branch
      %381 = sbr.rel (%p379) target = $region60
    $region59: #{dlrm_predict.1} parent=5 // pred_region
      // Predicated region
      $region61: #{dlrm_predict.1} parent=59 // pred_check
        %p382 = pneg %p41
      $region62: #{dlrm_predict.1} parent=59 // pred_check_branch
        %384 = sbr.rel (%p382) target = $region64
      $region63: #{dlrm_predict.1} parent=59 // pred_region
        %s385 = smul.u32 16, %s21
        %p386 = scmp.lt.s32.totalorder %s385, 31
        %s387 = scalar_select %p386, %s385, 31
        %s388 = smul.addr %s387, 8
        %s389 = scalar_lea.vmem %s0, %s388
        %s390 = smul.u32 16, %s21
      $region64: #{dlrm_predict.1} parent=59 // pred_fallthru
        _
      // Predicated region
      $region65: #{dlrm_predict.1} parent=59 // pred_check
        %p391 = pneg %p67
      $region66: #{dlrm_predict.1} parent=59 // pred_check_branch
        %393 = sbr.rel (%p391) target = $region68
      $region67: #{dlrm_predict.1} parent=59 // pred_region
        %s394 = smul.u32 16, %s21
        %p395 = scmp.lt.s32.totalorder %s394, 31
        %s396 = scalar_select %p395, %s394, 31
        %s397 = smul.addr %s396, 8
        %s398 = scalar_lea.vmem %s1, %s397
        %s399 = smul.u32 16, %s21
      $region68: #{dlrm_predict.1} parent=59 // pred_fallthru
        _
    $region60: #{dlrm_predict.1} parent=5 // pred_fallthru
      _
    %p400 = scmp.le.s32.totalorder 1, %s21
    %p401 = scmp.lt.s32.totalorder %s21, 3
    %p402 = pnand %p400, %p401
    %p403 = pneg %p402
    // Predicated region
    $region69: #{dlrm_predict.1} parent=5 // pred_check
      _
    $region70: #{dlrm_predict.1} parent=5 // pred_check_branch
      %405 = sbr.rel (%p402) target = $region72
    $region71: #{dlrm_predict.1} parent=5 // pred_region
      %s406 = ssub.s32 %s21, 1
      %s407 = smul.u32 16, %s26
      %p408 = scmp.lt.s32.totalorder %s407, 31
      %s409 = scalar_select %p408, %s407, 31
      %s410 = smul.addr %s409, 8
      %s411 = scalar_lea.vmem %s0, %s410
      %p412 = pneg %p47
      %p413 = pneg %p44
      %s414 = smul.u32 16, %s26
      %p415 = scmp.lt.s32.totalorder %s414, 31
      %s416 = scalar_select %p415, %s414, 31
      %s417 = smul.addr %s416, 8
      %s418 = scalar_lea.vmem %s1, %s417
      %p419 = pneg %p73
      %p420 = pneg %p70
      %p421 = pneg %p94
      %p422 = pneg %p91
      %p423 = pneg %p115
      %p424 = pneg %p112
      %p425 = pneg %p136
      %p426 = pneg %p133
      %p427 = pneg %p157
      %p428 = pneg %p154
      %p429 = pneg %p178
      %p430 = pneg %p175
      %p431 = pneg %p199
      %p432 = pneg %p196
      %p433 = pneg %p220
      %p434 = pneg %p217
      %p435 = pneg %p241
      %p436 = pneg %p238
      %p437 = pneg %p262
      %p438 = pneg %p259
      %p439 = pneg %p283
      %p440 = pneg %p280
      %p441 = pneg %p304
      %p442 = pneg %p301
      %p443 = pneg %p330
      %p444 = pneg %p327
      %p445 = scmp.lt.s32.totalorder %s26, 1
      %s446 = scalar_select %p445, %s26, 1
      %s447 = scalar_lea.vmem %s13, %s446
      %s448 = smul.u32 16, %s26
      %p449 = scmp.lt.s32.totalorder %s448, 31
      %s450 = scalar_select %p449, %s448, 31
      %s451 = smul.addr %s450, 8
      %s452 = scalar_lea.vmem %s0, %s451
      %s453 = smul.u32 16, %s26
      %s454 = smul.u32 16, %s26
      %p455 = scmp.lt.s32.totalorder %s454, 31
      %s456 = scalar_select %p455, %s454, 31
      %s457 = smul.addr %s456, 8
      %s458 = scalar_lea.vmem %s1, %s457
      %s459 = smul.u32 16, %s26
      %p460 = scmp.lt.s32.totalorder %s26, 1
      %s461 = scalar_select %p460, %s26, 1
      %s462 = scalar_lea.vmem %s13, %s461
      %v463 = vld [vmem:[%s452] sm:$0xff]
      %v464 = vld [vmem:[%s452 + $0x8] sm:$0xff]
      %v465 = vld [vmem:[%s452 + $0x10] sm:$0xff]
      %v466 = vld [vmem:[%s452 + $0x18] sm:$0xff]
      %v467 = vld [vmem:[%s452 + $0x20] sm:$0xff]
      %v468 = vld [vmem:[%s452 + $0x28] sm:$0xff]
      %v469 = vld [vmem:[%s452 + $0x30] sm:$0xff]
      %v470 = vld [vmem:[%s452 + $0x38] sm:$0xff]
      %v471 = vld [vmem:[%s452 + $0x40] sm:$0xff]
      %v472 = vld [vmem:[%s452 + $0x48] sm:$0xff]
      %v473 = vld [vmem:[%s452 + $0x50] sm:$0xff]
      %v474 = vld [vmem:[%s452 + $0x58] sm:$0xff]
      %v475 = vld [vmem:[%s452 + $0x60] sm:$0xff]
      %v476 = vld [vmem:[%s452 + $0x68] sm:$0xff]
      %v477 = vld [vmem:[%s452 + $0x70] sm:$0xff]
      %v478 = vld [vmem:[%s452 + $0x78] sm:$0xff]
      %v479 = vld [vmem:[%s2] sm:$0xf]
      %v480 = vld [vmem:[%s3] sm:$0x1]
      %v482 = vlaneseq
      %v483 = vshrl.u32 %v482, 7
      %v484 = vsub.s32 0, %v483
      %v485 = vrot.slane %v480, %v484
      %vm487 = vcmask 31744
      %v489 = vsel %vm487, %v463, 0
      %v492 = vsel %vm487, %v464, 0
      %v495 = vsel %vm487, %v465, 0
      %v498 = vsel %vm487, %v466, 0
      %v501 = vsel %vm487, %v467, 0
      %v504 = vsel %vm487, %v468, 0
      %v507 = vsel %vm487, %v469, 0
      %v510 = vsel %vm487, %v470, 0
      %v513 = vsel %vm487, %v471, 0
      %v516 = vsel %vm487, %v472, 0
      %v519 = vsel %vm487, %v473, 0
      %v522 = vsel %vm487, %v474, 0
      %v525 = vsel %vm487, %v475, 0
      %v528 = vsel %vm487, %v476, 0
      %v531 = vsel %vm487, %v477, 0
      %v534 = vsel %vm487, %v478, 0
      %vm536 = vcmask 1043456
      %v538 = vsel %vm536, %v479, 0
      %540 = vmatprep.subr.mxu0 0.0
      %541 = vmatpush1.msra.mxu0 %v538
      %542 = vmatprep.subr.mxu0 0.0
      %543 = vmatpush1.msra.mxu0 0.0
      %544 = vmatprep.subr.mxu0 0.0
      %545 = vmatpush1.msra.mxu0 0.0
      %546 = vmatprep.subr.mxu0 0.0
      %547 = vmatpush1.msra.mxu0 0.0
      %548 = vmatprep.subr.mxu0 0.0
      %549 = vmatpush1.msra.mxu0 0.0
      %550 = vmatprep.subr.mxu0 0.0
      %551 = vmatpush1.msra.mxu0 0.0
      %552 = vmatprep.subr.mxu0 0.0
      %553 = vmatpush1.msra.mxu0 0.0
      %554 = vmatprep.subr.mxu0 0.0
      %555 = vmatpush1.msra.mxu0 0.0
      %556 = vmatprep.subr.mxu0 0.0
      %557 = vmatpush1.msra.mxu0 0.0
      %558 = vmatprep.subr.mxu0 0.0
      %559 = vmatpush1.msra.mxu0 0.0
      %560 = vmatprep.subr.mxu0 0.0
      %561 = vmatpush1.msra.mxu0 0.0
      %562 = vmatprep.subr.mxu0 0.0
      %563 = vmatpush1.msra.mxu0 0.0
      %564 = vmatprep.subr.mxu0 0.0
      %565 = vmatpush1.msra.mxu0 0.0
      %566 = vmatprep.subr.mxu0 0.0
      %567 = vmatpush1.msra.mxu0 0.0
      %568 = vmatprep.subr.mxu0 0.0
      %569 = vmatpush1.msra.mxu0 0.0
      %570 = vmatprep.subr.mxu0 0.0
      %571 = vmatpush1.msra.mxu0 0.0
      %572 = vmatprep.subr.mxu0 0.0
      %573 = vmatpush1.msra.mxu0 0.0
      %574 = vmatprep.subr.mxu0 0.0
      %575 = vmatpush1.msra.mxu0 0.0
      %576 = vmatprep.subr.mxu0 0.0
      %577 = vmatpush1.msra.mxu0 0.0
      %578 = vmatprep.subr.mxu0 0.0
      %579 = vmatpush1.msra.mxu0 0.0
      %580 = vmatprep.subr.mxu0 0.0
      %581 = vmatpush1.msra.mxu0 0.0
      %582 = vmatprep.subr.mxu0 0.0
      %583 = vmatpush1.msra.mxu0 0.0
      %584 = vmatprep.subr.mxu0 0.0
      %585 = vmatpush1.msra.mxu0 0.0
      %586 = vmatprep.subr.mxu0 0.0
      %587 = vmatpush1.msra.mxu0 0.0
      %588 = vmatprep.subr.mxu0 0.0
      %589 = vmatpush1.msra.mxu0 0.0
      %590 = vmatprep.subr.mxu0 0.0
      %591 = vmatpush1.msra.mxu0 0.0
      %592 = vmatprep.subr.mxu0 0.0
      %593 = vmatpush1.msra.mxu0 0.0
      %594 = vmatprep.subr.mxu0 0.0
      %595 = vmatpush1.msra.mxu0 0.0
      %596 = vmatprep.subr.mxu0 0.0
      %597 = vmatpush1.msra.mxu0 0.0
      %598 = vmatprep.subr.mxu0 0.0
      %599 = vmatpush1.msra.mxu0 0.0
      %600 = vmatprep.subr.mxu0 0.0
      %601 = vmatpush1.msra.mxu0 0.0
      %602 = vmatprep.subr.mxu0 0.0
      %603 = vmatpush1.msra.mxu0 0.0
      %604 = vmatprep.mubr.f32.mxu0 0.0
      %605 = vmatmul.mubr.f32.gmra.mrb[0].mxu0 %v489
      %v606 = vpop.f32.mrb[0].mxu0
      %v607 = vadd.f32 %v485, %v606
      %v608 = vpop.f32.mrb[0].mxu0
      %609 = vmatprep.mubr.f32.mxu0 0.0
      %610 = vmatmul.mubr.f32.gmra.mrb[0].mxu0 %v492
      %v611 = vpop.f32.mrb[0].mxu0
      %v612 = vadd.f32 %v485, %v611
      %v613 = vpop.f32.mrb[0].mxu0
      %614 = vmatprep.mubr.f32.mxu0 0.0
      %615 = vmatmul.mubr.f32.gmra.mrb[0].mxu0 %v495
      %v616 = vpop.f32.mrb[0].mxu0
      %v617 = vadd.f32 %v485, %v616
      %v618 = vpop.f32.mrb[0].mxu0
      %619 = vmatprep.mubr.f32.mxu0 0.0
      %620 = vmatmul.mubr.f32.gmra.mrb[0].mxu0 %v498
      %v621 = vpop.f32.mrb[0].mxu0
      %v622 = vadd.f32 %v485, %v621
      %v623 = vpop.f32.mrb[0].mxu0
      %624 = vmatprep.mubr.f32.mxu0 0.0
      %625 = vmatmul.mubr.f32.gmra.mrb[0].mxu0 %v501
      %v626 = vpop.f32.mrb[0].mxu0
      %v627 = vadd.f32 %v485, %v626
      %v628 = vpop.f32.mrb[0].mxu0
      %629 = vmatprep.mubr.f32.mxu0 0.0
      %630 = vmatmul.mubr.f32.gmra.mrb[0].mxu0 %v504
      %v631 = vpop.f32.mrb[0].mxu0
      %v632 = vadd.f32 %v485, %v631
      %v633 = vpop.f32.mrb[0].mxu0
      %634 = vmatprep.mubr.f32.mxu0 0.0
      %635 = vmatmul.mubr.f32.gmra.mrb[0].mxu0 %v507
      %v636 = vpop.f32.mrb[0].mxu0
      %v637 = vadd.f32 %v485, %v636
      %v638 = vpop.f32.mrb[0].mxu0
      %639 = vmatprep.mubr.f32.mxu0 0.0
      %640 = vmatmul.mubr.f32.gmra.mrb[0].mxu0 %v510
      %v641 = vpop.f32.mrb[0].mxu0
      %v642 = vadd.f32 %v485, %v641
      %v643 = vpop.f32.mrb[0].mxu0
      %644 = vmatprep.mubr.f32.mxu0 0.0
      %645 = vmatmul.mubr.f32.gmra.mrb[0].mxu0 %v513
      %v646 = vpop.f32.mrb[0].mxu0
      %v647 = vadd.f32 %v485, %v646
      %v648 = vpop.f32.mrb[0].mxu0
      %649 = vmatprep.mubr.f32.mxu0 0.0
      %650 = vmatmul.mubr.f32.gmra.mrb[0].mxu0 %v516
      %v651 = vpop.f32.mrb[0].mxu0
      %v652 = vadd.f32 %v485, %v651
      %v653 = vpop.f32.mrb[0].mxu0
      %654 = vmatprep.mubr.f32.mxu0 0.0
      %655 = vmatmul.mubr.f32.gmra.mrb[0].mxu0 %v519
      %v656 = vpop.f32.mrb[0].mxu0
      %v657 = vadd.f32 %v485, %v656
      %v658 = vpop.f32.mrb[0].mxu0
      %659 = vmatprep.mubr.f32.mxu0 0.0
      %660 = vmatmul.mubr.f32.gmra.mrb[0].mxu0 %v522
      %v661 = vpop.f32.mrb[0].mxu0
      %v662 = vadd.f32 %v485, %v661
      %v663 = vpop.f32.mrb[0].mxu0
      %664 = vmatprep.mubr.f32.mxu0 0.0
      %665 = vmatmul.mubr.f32.gmra.mrb[0].mxu0 %v525
      %v666 = vpop.f32.mrb[0].mxu0
      %v667 = vadd.f32 %v485, %v666
      %v668 = vpop.f32.mrb[0].mxu0
      %669 = vmatprep.mubr.f32.mxu0 0.0
      %670 = vmatmul.mubr.f32.gmra.mrb[0].mxu0 %v528
      %v671 = vpop.f32.mrb[0].mxu0
      %v672 = vadd.f32 %v485, %v671
      %v673 = vpop.f32.mrb[0].mxu0
      %674 = vmatprep.mubr.f32.mxu0 0.0
      %675 = vmatmul.mubr.f32.gmra.mrb[0].mxu0 %v531
      %v676 = vpop.f32.mrb[0].mxu0
      %v677 = vadd.f32 %v485, %v676
      %v678 = vpop.f32.mrb[0].mxu0
      %679 = vmatprep.mubr.f32.mxu0 0.0
      %680 = vmatmul.mubr.f32.gmra.mrb[0].mxu0 %v534
      %v681 = vpop.f32.mrb[0].mxu0
      %v682 = vadd.f32 %v485, %v681
      %v683 = vpop.f32.mrb[0].mxu0
      %684 = vdwg.mxu0
      %v685 = vmax.f32 %v607, 0.0
      %v686 = vmax.f32 %v612, 0.0
      %v687 = vmax.f32 %v617, 0.0
      %v688 = vmax.f32 %v622, 0.0
      %v689 = vmax.f32 %v627, 0.0
      %v690 = vmax.f32 %v632, 0.0
      %v691 = vmax.f32 %v637, 0.0
      %v692 = vmax.f32 %v642, 0.0
      %v693 = vmax.f32 %v647, 0.0
      %v694 = vmax.f32 %v652, 0.0
      %v695 = vmax.f32 %v657, 0.0
      %v696 = vmax.f32 %v662, 0.0
      %v697 = vmax.f32 %v667, 0.0
      %v698 = vmax.f32 %v672, 0.0
      %v699 = vmax.f32 %v677, 0.0
      %v700 = vmax.f32 %v682, 0.0
      %v701 = vld [vmem:[%s4] sm:$0xff]
      %v702 = vld [vmem:[%s4 + $0x8] sm:$0xff]
      %v703 = vld [vmem:[%s4 + $0x10] sm:$0xff]
      %v704 = vld [vmem:[%s4 + $0x18] sm:$0xff]
      %v705 = vld [vmem:[%s5] sm:$0x1]
      %v707 = vlaneseq
      %v708 = vshrl.u32 %v707, 7
      %v709 = vsub.s32 0, %v708
      %v710 = vrot.slane %v705, %v709
      %vm712 = vcmask 261120
      %v714 = vsel %vm712, %v685, 0
      %v717 = vsel %vm712, %v686, 0
      %v720 = vsel %vm712, %v687, 0
      %v723 = vsel %vm712, %v688, 0
      %v726 = vsel %vm712, %v689, 0
      %v729 = vsel %vm712, %v690, 0
      %v732 = vsel %vm712, %v691, 0
      %v735 = vsel %vm712, %v692, 0
      %v738 = vsel %vm712, %v693, 0
      %v741 = vsel %vm712, %v694, 0
      %v744 = vsel %vm712, %v695, 0
      %v747 = vsel %vm712, %v696, 0
      %v750 = vsel %vm712, %v697, 0
      %v753 = vsel %vm712, %v698, 0
      %v756 = vsel %vm712, %v699, 0
      %v759 = vsel %vm712, %v700, 0
      %761 = vmatprep.subr.mxu0 0.0
      %762 = vmatpush1.msra.mxu0 %v701
      %763 = vmatprep.subr.mxu0 0.0
      %764 = vmatpush1.msra.mxu0 %v702
      %765 = vmatprep.subr.mxu0 0.0
      %766 = vmatpush1.msra.mxu0 %v703
      %767 = vmatprep.subr.mxu0 0.0
      %768 = vmatpush1.msra.mxu0 %v704
      %769 = vmatprep.subr.mxu0 0.0
      %770 = vmatpush1.msra.mxu0 0.0
      %771 = vmatprep.subr.mxu0 0.0
      %772 = vmatpush1.msra.mxu0 0.0
      %773 = vmatprep.subr.mxu0 0.0
      %774 = vmatpush1.msra.mxu0 0.0
      %775 = vmatprep.subr.mxu0 0.0
      %776 = vmatpush1.msra.mxu0 0.0
      %777 = vmatprep.subr.mxu0 0.0
      %778 = vmatpush1.msra.mxu0 0.0
      %779 = vmatprep.subr.mxu0 0.0
      %780 = vmatpush1.msra.mxu0 0.0
      %781 = vmatprep.subr.mxu0 0.0
      %782 = vmatpush1.msra.mxu0 0.0
      %783 = vmatprep.subr.mxu0 0.0
      %784 = vmatpush1.msra.mxu0 0.0
      %785 = vmatprep.subr.mxu0 0.0
      %786 = vmatpush1.msra.mxu0 0.0
      %787 = vmatprep.subr.mxu0 0.0
      %788 = vmatpush1.msra.mxu0 0.0
      %789 = vmatprep.subr.mxu0 0.0
      %790 = vmatpush1.msra.mxu0 0.0
      %791 = vmatprep.subr.mxu0 0.0
      %792 = vmatpush1.msra.mxu0 0.0
      %793 = vmatprep.subr.mxu0 0.0
      %794 = vmatpush1.msra.mxu0 0.0
      %795 = vmatprep.subr.mxu0 0.0
      %796 = vmatpush1.msra.mxu0 0.0
      %797 = vmatprep.subr.mxu0 0.0
      %798 = vmatpush1.msra.mxu0 0.0
      %799 = vmatprep.subr.mxu0 0.0
      %800 = vmatpush1.msra.mxu0 0.0
      %801 = vmatprep.subr.mxu0 0.0
      %802 = vmatpush1.msra.mxu0 0.0
      %803 = vmatprep.subr.mxu0 0.0
      %804 = vmatpush1.msra.mxu0 0.0
      %805 = vmatprep.subr.mxu0 0.0
      %806 = vmatpush1.msra.mxu0 0.0
      %807 = vmatprep.subr.mxu0 0.0
      %808 = vmatpush1.msra.mxu0 0.0
      %809 = vmatprep.subr.mxu0 0.0
      %810 = vmatpush1.msra.mxu0 0.0
      %811 = vmatprep.subr.mxu0 0.0
      %812 = vmatpush1.msra.mxu0 0.0
      %813 = vmatprep.subr.mxu0 0.0
      %814 = vmatpush1.msra.mxu0 0.0
      %815 = vmatprep.subr.mxu0 0.0
      %816 = vmatpush1.msra.mxu0 0.0
      %817 = vmatprep.subr.mxu0 0.0
      %818 = vmatpush1.msra.mxu0 0.0
      %819 = vmatprep.subr.mxu0 0.0
      %820 = vmatpush1.msra.mxu0 0.0
      %821 = vmatprep.subr.mxu0 0.0
      %822 = vmatpush1.msra.mxu0 0.0
      %823 = vmatprep.subr.mxu0 0.0
      %824 = vmatpush1.msra.mxu0 0.0
      %825 = vmatprep.mubr.f32.mxu0 0.0
      %826 = vmatmul.mubr.f32.gmra.mrb[0].mxu0 %v714
      %v827 = vpop.f32.mrb[0].mxu0
      %v828 = vadd.f32 %v710, %v827
      %v829 = vpop.f32.mrb[0].mxu0
      %830 = vmatprep.mubr.f32.mxu0 0.0
      %831 = vmatmul.mubr.f32.gmra.mrb[0].mxu0 %v717
      %v832 = vpop.f32.mrb[0].mxu0
      %v833 = vadd.f32 %v710, %v832
      %v834 = vpop.f32.mrb[0].mxu0
      %835 = vmatprep.mubr.f32.mxu0 0.0
      %836 = vmatmul.mubr.f32.gmra.mrb[0].mxu0 %v720
      %v837 = vpop.f32.mrb[0].mxu0
      %v838 = vadd.f32 %v710, %v837
      %v839 = vpop.f32.mrb[0].mxu0
      %840 = vmatprep.mubr.f32.mxu0 0.0
      %841 = vmatmul.mubr.f32.gmra.mrb[0].mxu0 %v723
      %v842 = vpop.f32.mrb[0].mxu0
      %v843 = vadd.f32 %v710, %v842
      %v844 = vpop.f32.mrb[0].mxu0
      %845 = vmatprep.mubr.f32.mxu0 0.0
      %846 = vmatmul.mubr.f32.gmra.mrb[0].mxu0 %v726
      %v847 = vpop.f32.mrb[0].mxu0
      %v848 = vadd.f32 %v710, %v847
      %v849 = vpop.f32.mrb[0].mxu0
      %850 = vmatprep.mubr.f32.mxu0 0.0
      %851 = vmatmul.mubr.f32.gmra.mrb[0].mxu0 %v729
      %v852 = vpop.f32.mrb[0].mxu0
      %v853 = vadd.f32 %v710, %v852
      %v854 = vpop.f32.mrb[0].mxu0
      %855 = vmatprep.mubr.f32.mxu0 0.0
      %856 = vmatmul.mubr.f32.gmra.mrb[0].mxu0 %v732
      %v857 = vpop.f32.mrb[0].mxu0
      %v858 = vadd.f32 %v710, %v857
      %v859 = vpop.f32.mrb[0].mxu0
      %860 = vmatprep.mubr.f32.mxu0 0.0
      %861 = vmatmul.mubr.f32.gmra.mrb[0].mxu0 %v735
      %v862 = vpop.f32.mrb[0].mxu0
      %v863 = vadd.f32 %v710, %v862
      %v864 = vpop.f32.mrb[0].mxu0
      %865 = vmatprep.mubr.f32.mxu0 0.0
      %866 = vmatmul.mubr.f32.gmra.mrb[0].mxu0 %v738
      %v867 = vpop.f32.mrb[0].mxu0
      %v868 = vadd.f32 %v710, %v867
      %v869 = vpop.f32.mrb[0].mxu0
      %870 = vmatprep.mubr.f32.mxu0 0.0
      %871 = vmatmul.mubr.f32.gmra.mrb[0].mxu0 %v741
      %v872 = vpop.f32.mrb[0].mxu0
      %v873 = vadd.f32 %v710, %v872
      %v874 = vpop.f32.mrb[0].mxu0
      %875 = vmatprep.mubr.f32.mxu0 0.0
      %876 = vmatmul.mubr.f32.gmra.mrb[0].mxu0 %v744
      %v877 = vpop.f32.mrb[0].mxu0
      %v878 = vadd.f32 %v710, %v877
      %v879 = vpop.f32.mrb[0].mxu0
      %880 = vmatprep.mubr.f32.mxu0 0.0
      %881 = vmatmul.mubr.f32.gmra.mrb[0].mxu0 %v747
      %v882 = vpop.f32.mrb[0].mxu0
      %v883 = vadd.f32 %v710, %v882
      %v884 = vpop.f32.mrb[0].mxu0
      %885 = vmatprep.mubr.f32.mxu0 0.0
      %886 = vmatmul.mubr.f32.gmra.mrb[0].mxu0 %v750
      %v887 = vpop.f32.mrb[0].mxu0
      %v888 = vadd.f32 %v710, %v887
      %v889 = vpop.f32.mrb[0].mxu0
      %890 = vmatprep.mubr.f32.mxu0 0.0
      %891 = vmatmul.mubr.f32.gmra.mrb[0].mxu0 %v753
      %v892 = vpop.f32.mrb[0].mxu0
      %v893 = vadd.f32 %v710, %v892
      %v894 = vpop.f32.mrb[0].mxu0
      %895 = vmatprep.mubr.f32.mxu0 0.0
      %896 = vmatmul.mubr.f32.gmra.mrb[0].mxu0 %v756
      %v897 = vpop.f32.mrb[0].mxu0
      %v898 = vadd.f32 %v710, %v897
      %v899 = vpop.f32.mrb[0].mxu0
      %900 = vmatprep.mubr.f32.mxu0 0.0
      %901 = vmatmul.mubr.f32.gmra.mrb[0].mxu0 %v759
      %v902 = vpop.f32.mrb[0].mxu0
      %v903 = vadd.f32 %v710, %v902
      %v904 = vpop.f32.mrb[0].mxu0
      %905 = vdwg.mxu0
      %v906 = vmax.f32 %v828, 0.0
      %v907 = vmax.f32 %v833, 0.0
      %v908 = vmax.f32 %v838, 0.0
      %v909 = vmax.f32 %v843, 0.0
      %v910 = vmax.f32 %v848, 0.0
      %v911 = vmax.f32 %v853, 0.0
      %v912 = vmax.f32 %v858, 0.0
      %v913 = vmax.f32 %v863, 0.0
      %v914 = vmax.f32 %v868, 0.0
      %v915 = vmax.f32 %v873, 0.0
      %v916 = vmax.f32 %v878, 0.0
      %v917 = vmax.f32 %v883, 0.0
      %v918 = vmax.f32 %v888, 0.0
      %v919 = vmax.f32 %v893, 0.0
      %v920 = vmax.f32 %v898, 0.0
      %v921 = vmax.f32 %v903, 0.0
      %v922 = vld [vmem:[%s458] sm:$0xff]
      %v923 = vld [vmem:[%s458 + $0x8] sm:$0xff]
      %v924 = vld [vmem:[%s458 + $0x10] sm:$0xff]
      %v925 = vld [vmem:[%s458 + $0x18] sm:$0xff]
      %v926 = vld [vmem:[%s458 + $0x20] sm:$0xff]
      %v927 = vld [vmem:[%s458 + $0x28] sm:$0xff]
      %v928 = vld [vmem:[%s458 + $0x30] sm:$0xff]
      %v929 = vld [vmem:[%s458 + $0x38] sm:$0xff]
      %v930 = vld [vmem:[%s458 + $0x40] sm:$0xff]
      %v931 = vld [vmem:[%s458 + $0x48] sm:$0xff]
      %v932 = vld [vmem:[%s458 + $0x50] sm:$0xff]
      %v933 = vld [vmem:[%s458 + $0x58] sm:$0xff]
      %v934 = vld [vmem:[%s458 + $0x60] sm:$0xff]
      %v935 = vld [vmem:[%s458 + $0x68] sm:$0xff]
      %v936 = vld [vmem:[%s458 + $0x70] sm:$0xff]
      %v937 = vld [vmem:[%s458 + $0x78] sm:$0xff]
      %v938 = vld [vmem:[%s6] sm:$0xff]
      %v939 = vld [vmem:[%s6 + $0x8] sm:$0xff]
      %v940 = vld [vmem:[%s6 + $0x10] sm:$0xff]
      %v941 = vld [vmem:[%s6 + $0x18] sm:$0xff]
      %v942 = vld [vmem:[%s6 + $0x20] sm:$0xff]
      %v943 = vld [vmem:[%s6 + $0x28] sm:$0xff]
      %v944 = vld [vmem:[%s6 + $0x30] sm:$0xff]
      %v945 = vld [vmem:[%s6 + $0x38] sm:$0xff]
      %v946 = vld [vmem:[%s8] sm:$0x1]
      %v948 = vlaneseq
      %v949 = vshrl.u32 %v948, 7
      %v950 = vsub.s32 0, %v949
      %v951 = vrot.slane %v946, %v950
      %vm953 = vcmask 523264
      %v955 = vsel %vm953, %v906, 0
      %v958 = vsel %vm953, %v907, 0
      %v961 = vsel %vm953, %v908, 0
      %v964 = vsel %vm953, %v909, 0
      %v967 = vsel %vm953, %v910, 0
      %v970 = vsel %vm953, %v911, 0
      %v973 = vsel %vm953, %v912, 0
      %v976 = vsel %vm953, %v913, 0
      %v979 = vsel %vm953, %v914, 0
      %v982 = vsel %vm953, %v915, 0
      %v985 = vsel %vm953, %v916, 0
      %v988 = vsel %vm953, %v917, 0
      %v991 = vsel %vm953, %v918, 0
      %v994 = vsel %vm953, %v919, 0
      %v997 = vsel %vm953, %v920, 0
      %v1000 = vsel %vm953, %v921, 0
      %1002 = vmatprep.subr.mxu0 0.0
      %1003 = vmatpush1.msra.mxu0 %v938
      %1004 = vmatprep.subr.mxu0 0.0
      %1005 = vmatpush1.msra.mxu0 %v939
      %1006 = vmatprep.subr.mxu0 0.0
      %1007 = vmatpush1.msra.mxu0 %v940
      %1008 = vmatprep.subr.mxu0 0.0
      %1009 = vmatpush1.msra.mxu0 %v941
      %1010 = vmatprep.subr.mxu0 0.0
      %1011 = vmatpush1.msra.mxu0 %v942
      %1012 = vmatprep.subr.mxu0 0.0
      %1013 = vmatpush1.msra.mxu0 %v943
      %1014 = vmatprep.subr.mxu0 0.0
      %1015 = vmatpush1.msra.mxu0 %v944
      %1016 = vmatprep.subr.mxu0 0.0
      %1017 = vmatpush1.msra.mxu0 %v945
      %1018 = vmatprep.subr.mxu0 0.0
      %1019 = vmatpush1.msra.mxu0 0.0
      %1020 = vmatprep.subr.mxu0 0.0
      %1021 = vmatpush1.msra.mxu0 0.0
      %1022 = vmatprep.subr.mxu0 0.0
      %1023 = vmatpush1.msra.mxu0 0.0
      %1024 = vmatprep.subr.mxu0 0.0
      %1025 = vmatpush1.msra.mxu0 0.0
      %1026 = vmatprep.subr.mxu0 0.0
      %1027 = vmatpush1.msra.mxu0 0.0
      %1028 = vmatprep.subr.mxu0 0.0
      %1029 = vmatpush1.msra.mxu0 0.0
      %1030 = vmatprep.subr.mxu0 0.0
      %1031 = vmatpush1.msra.mxu0 0.0
      %1032 = vmatprep.subr.mxu0 0.0
      %1033 = vmatpush1.msra.mxu0 0.0
      %1034 = vmatprep.subr.mxu0 0.0
      %1035 = vmatpush1.msra.mxu0 0.0
      %1036 = vmatprep.subr.mxu0 0.0
      %1037 = vmatpush1.msra.mxu0 0.0
      %1038 = vmatprep.subr.mxu0 0.0
      %1039 = vmatpush1.msra.mxu0 0.0
      %1040 = vmatprep.subr.mxu0 0.0
      %1041 = vmatpush1.msra.mxu0 0.0
      %1042 = vmatprep.subr.mxu0 0.0
      %1043 = vmatpush1.msra.mxu0 0.0
      %1044 = vmatprep.subr.mxu0 0.0
      %1045 = vmatpush1.msra.mxu0 0.0
      %1046 = vmatprep.subr.mxu0 0.0
      %1047 = vmatpush1.msra.mxu0 0.0
      %1048 = vmatprep.subr.mxu0 0.0
      %1049 = vmatpush1.msra.mxu0 0.0
      %1050 = vmatprep.subr.mxu0 0.0
      %1051 = vmatpush1.msra.mxu0 0.0
      %1052 = vmatprep.subr.mxu0 0.0
      %1053 = vmatpush1.msra.mxu0 0.0
      %1054 = vmatprep.subr.mxu0 0.0
      %1055 = vmatpush1.msra.mxu0 0.0
      %1056 = vmatprep.subr.mxu0 0.0
      %1057 = vmatpush1.msra.mxu0 0.0
      %1058 = vmatprep.subr.mxu0 0.0
      %1059 = vmatpush1.msra.mxu0 0.0
      %1060 = vmatprep.subr.mxu0 0.0
      %1061 = vmatpush1.msra.mxu0 0.0
      %1062 = vmatprep.subr.mxu0 0.0
      %1063 = vmatpush1.msra.mxu0 0.0
      %1064 = vmatprep.subr.mxu0 0.0
      %1065 = vmatpush1.msra.mxu0 0.0
      %1066 = vmatprep.mubr.f32.mxu0 0.0
      %1067 = vmatmul.mubr.f32.gmra.mrb[0].mxu0 %v955
      %v1068 = vpop.f32.mrb[0].mxu0
      %v1069 = vadd.f32 %v951, %v1068
      %v1070 = vpop.f32.mrb[0].mxu0
      %1071 = vmatprep.mubr.f32.mxu0 0.0
      %1072 = vmatmul.mubr.f32.gmra.mrb[0].mxu0 %v958
      %v1073 = vpop.f32.mrb[0].mxu0
      %v1074 = vadd.f32 %v951, %v1073
      %v1075 = vpop.f32.mrb[0].mxu0
      %1076 = vmatprep.mubr.f32.mxu0 0.0
      %1077 = vmatmul.mubr.f32.gmra.mrb[0].mxu0 %v961
      %v1078 = vpop.f32.mrb[0].mxu0
      %v1079 = vadd.f32 %v951, %v1078
      %v1080 = vpop.f32.mrb[0].mxu0
      %1081 = vmatprep.mubr.f32.mxu0 0.0
      %1082 = vmatmul.mubr.f32.gmra.mrb[0].mxu0 %v964
      %v1083 = vpop.f32.mrb[0].mxu0
      %v1084 = vadd.f32 %v951, %v1083
      %v1085 = vpop.f32.mrb[0].mxu0
      %1086 = vmatprep.mubr.f32.mxu0 0.0
      %1087 = vmatmul.mubr.f32.gmra.mrb[0].mxu0 %v967
      %v1088 = vpop.f32.mrb[0].mxu0
      %v1089 = vadd.f32 %v951, %v1088
      %v1090 = vpop.f32.mrb[0].mxu0
      %1091 = vmatprep.mubr.f32.mxu0 0.0
      %1092 = vmatmul.mubr.f32.gmra.mrb[0].mxu0 %v970
      %v1093 = vpop.f32.mrb[0].mxu0
      %v1094 = vadd.f32 %v951, %v1093
      %v1095 = vpop.f32.mrb[0].mxu0
      %1096 = vmatprep.mubr.f32.mxu0 0.0
      %1097 = vmatmul.mubr.f32.gmra.mrb[0].mxu0 %v973
      %v1098 = vpop.f32.mrb[0].mxu0
      %v1099 = vadd.f32 %v951, %v1098
      %v1100 = vpop.f32.mrb[0].mxu0
      %1101 = vmatprep.mubr.f32.mxu0 0.0
      %1102 = vmatmul.mubr.f32.gmra.mrb[0].mxu0 %v976
      %v1103 = vpop.f32.mrb[0].mxu0
      %v1104 = vadd.f32 %v951, %v1103
      %v1105 = vpop.f32.mrb[0].mxu0
      %1106 = vmatprep.mubr.f32.mxu0 0.0
      %1107 = vmatmul.mubr.f32.gmra.mrb[0].mxu0 %v979
      %v1108 = vpop.f32.mrb[0].mxu0
      %v1109 = vadd.f32 %v951, %v1108
      %v1110 = vpop.f32.mrb[0].mxu0
      %1111 = vmatprep.mubr.f32.mxu0 0.0
      %1112 = vmatmul.mubr.f32.gmra.mrb[0].mxu0 %v982
      %v1113 = vpop.f32.mrb[0].mxu0
      %v1114 = vadd.f32 %v951, %v1113
      %v1115 = vpop.f32.mrb[0].mxu0
      %1116 = vmatprep.mubr.f32.mxu0 0.0
      %1117 = vmatmul.mubr.f32.gmra.mrb[0].mxu0 %v985
      %v1118 = vpop.f32.mrb[0].mxu0
      %v1119 = vadd.f32 %v951, %v1118
      %v1120 = vpop.f32.mrb[0].mxu0
      %1121 = vmatprep.mubr.f32.mxu0 0.0
      %1122 = vmatmul.mubr.f32.gmra.mrb[0].mxu0 %v988
      %v1123 = vpop.f32.mrb[0].mxu0
      %v1124 = vadd.f32 %v951, %v1123
      %v1125 = vpop.f32.mrb[0].mxu0
      %1126 = vmatprep.mubr.f32.mxu0 0.0
      %1127 = vmatmul.mubr.f32.gmra.mrb[0].mxu0 %v991
      %v1128 = vpop.f32.mrb[0].mxu0
      %v1129 = vadd.f32 %v951, %v1128
      %v1130 = vpop.f32.mrb[0].mxu0
      %1131 = vmatprep.mubr.f32.mxu0 0.0
      %1132 = vmatmul.mubr.f32.gmra.mrb[0].mxu0 %v994
      %v1133 = vpop.f32.mrb[0].mxu0
      %v1134 = vadd.f32 %v951, %v1133
      %v1135 = vpop.f32.mrb[0].mxu0
      %1136 = vmatprep.mubr.f32.mxu0 0.0
      %1137 = vmatmul.mubr.f32.gmra.mrb[0].mxu0 %v997
      %v1138 = vpop.f32.mrb[0].mxu0
      %v1139 = vadd.f32 %v951, %v1138
      %v1140 = vpop.f32.mrb[0].mxu0
      %1141 = vmatprep.mubr.f32.mxu0 0.0
      %1142 = vmatmul.mubr.f32.gmra.mrb[0].mxu0 %v1000
      %v1143 = vpop.f32.mrb[0].mxu0
      %v1144 = vadd.f32 %v951, %v1143
      %v1145 = vpop.f32.mrb[0].mxu0
      %1146 = vdwg.mxu0
      %v1147 = vmul.f32 %v906, %v922
      %v1148 = vmul.f32 %v907, %v923
      %v1149 = vmul.f32 %v908, %v924
      %v1150 = vmul.f32 %v909, %v925
      %v1151 = vmul.f32 %v910, %v926
      %v1152 = vmul.f32 %v911, %v927
      %v1153 = vmul.f32 %v912, %v928
      %v1154 = vmul.f32 %v913, %v929
      %v1155 = vmul.f32 %v914, %v930
      %v1156 = vmul.f32 %v915, %v931
      %v1157 = vmul.f32 %v916, %v932
      %v1158 = vmul.f32 %v917, %v933
      %v1159 = vmul.f32 %v918, %v934
      %v1160 = vmul.f32 %v919, %v935
      %v1161 = vmul.f32 %v920, %v936
      %v1162 = vmul.f32 %v921, %v937
      %v1163 = vsel %vm953, %v1147, 0.0
      %1164 = vadd.xlane.f32.xlu0 %v1163
      %v1165 = vpop.xlane.xlu0 %1164
      %v1166 = vsel %vm953, %v1148, 0.0
      %1167 = vadd.xlane.f32.xlu0 %v1166
      %v1168 = vpop.xlane.xlu0 %1167
      %v1169 = vsel %vm953, %v1149, 0.0
      %1170 = vadd.xlane.f32.xlu0 %v1169
      %v1171 = vpop.xlane.xlu0 %1170
      %v1172 = vsel %vm953, %v1150, 0.0
      %1173 = vadd.xlane.f32.xlu0 %v1172
      %v1174 = vpop.xlane.xlu0 %1173
      %v1175 = vsel %vm953, %v1151, 0.0
      %1176 = vadd.xlane.f32.xlu0 %v1175
      %v1177 = vpop.xlane.xlu0 %1176
      %v1178 = vsel %vm953, %v1152, 0.0
      %1179 = vadd.xlane.f32.xlu0 %v1178
      %v1180 = vpop.xlane.xlu0 %1179
      %v1181 = vsel %vm953, %v1153, 0.0
      %1182 = vadd.xlane.f32.xlu0 %v1181
      %v1183 = vpop.xlane.xlu0 %1182
      %v1184 = vsel %vm953, %v1154, 0.0
      %1185 = vadd.xlane.f32.xlu0 %v1184
      %v1186 = vpop.xlane.xlu0 %1185
      %v1187 = vsel %vm953, %v1155, 0.0
      %1188 = vadd.xlane.f32.xlu0 %v1187
      %v1189 = vpop.xlane.xlu0 %1188
      %v1190 = vsel %vm953, %v1156, 0.0
      %1191 = vadd.xlane.f32.xlu0 %v1190
      %v1192 = vpop.xlane.xlu0 %1191
      %v1193 = vsel %vm953, %v1157, 0.0
      %1194 = vadd.xlane.f32.xlu0 %v1193
      %v1195 = vpop.xlane.xlu0 %1194
      %v1196 = vsel %vm953, %v1158, 0.0
      %1197 = vadd.xlane.f32.xlu0 %v1196
      %v1198 = vpop.xlane.xlu0 %1197
      %v1199 = vsel %vm953, %v1159, 0.0
      %1200 = vadd.xlane.f32.xlu0 %v1199
      %v1201 = vpop.xlane.xlu0 %1200
      %v1202 = vsel %vm953, %v1160, 0.0
      %1203 = vadd.xlane.f32.xlu0 %v1202
      %v1204 = vpop.xlane.xlu0 %1203
      %v1205 = vsel %vm953, %v1161, 0.0
      %1206 = vadd.xlane.f32.xlu0 %v1205
      %v1207 = vpop.xlane.xlu0 %1206
      %v1208 = vsel %vm953, %v1162, 0.0
      %1209 = vadd.xlane.f32.xlu0 %v1208
      %v1210 = vpop.xlane.xlu0 %1209
      %v1211 = vld [vmem:[%s7] sm:$0x1]
      %v1212 = vlaneseq
      %v1213 = vshrl.u32 %v1212, 7
      %v1214 = vsub.s32 0, %v1213
      %v1215 = vrot.slane %v1211, %v1214
      %v1216 = vmul.f32 %v1165, %v1215
      %v1217 = vmul.f32 %v1168, %v1215
      %v1218 = vmul.f32 %v1171, %v1215
      %v1219 = vmul.f32 %v1174, %v1215
      %v1220 = vmul.f32 %v1177, %v1215
      %v1221 = vmul.f32 %v1180, %v1215
      %v1222 = vmul.f32 %v1183, %v1215
      %v1223 = vmul.f32 %v1186, %v1215
      %v1224 = vmul.f32 %v1189, %v1215
      %v1225 = vmul.f32 %v1192, %v1215
      %v1226 = vmul.f32 %v1195, %v1215
      %v1227 = vmul.f32 %v1198, %v1215
      %v1228 = vmul.f32 %v1201, %v1215
      %v1229 = vmul.f32 %v1204, %v1215
      %v1230 = vmul.f32 %v1207, %v1215
      %v1231 = vmul.f32 %v1210, %v1215
      %v1232 = vadd.f32 %v1069, %v1216
      %v1233 = vadd.f32 %v1074, %v1217
      %v1234 = vadd.f32 %v1079, %v1218
      %v1235 = vadd.f32 %v1084, %v1219
      %v1236 = vadd.f32 %v1089, %v1220
      %v1237 = vadd.f32 %v1094, %v1221
      %v1238 = vadd.f32 %v1099, %v1222
      %v1239 = vadd.f32 %v1104, %v1223
      %v1240 = vadd.f32 %v1109, %v1224
      %v1241 = vadd.f32 %v1114, %v1225
      %v1242 = vadd.f32 %v1119, %v1226
      %v1243 = vadd.f32 %v1124, %v1227
      %v1244 = vadd.f32 %v1129, %v1228
      %v1245 = vadd.f32 %v1134, %v1229
      %v1246 = vadd.f32 %v1139, %v1230
      %v1247 = vadd.f32 %v1144, %v1231
      %1264 = vrot.lane.b32.xlu0 %v922, 64
      %v1265 = vpop.permute.xlu0 %1264
      %1266 = vrot.lane.b32.xlu0 %v923, 64
      %v1267 = vpop.permute.xlu0 %1266
      %1268 = vrot.lane.b32.xlu0 %v924, 64
      %v1269 = vpop.permute.xlu0 %1268
      %1270 = vrot.lane.b32.xlu0 %v925, 64
      %v1271 = vpop.permute.xlu0 %1270
      %1272 = vrot.lane.b32.xlu0 %v926, 64
      %v1273 = vpop.permute.xlu0 %1272
      %1274 = vrot.lane.b32.xlu0 %v927, 64
      %v1275 = vpop.permute.xlu0 %1274
      %1276 = vrot.lane.b32.xlu0 %v928, 64
      %v1277 = vpop.permute.xlu0 %1276
      %1278 = vrot.lane.b32.xlu0 %v929, 64
      %v1279 = vpop.permute.xlu0 %1278
      %1280 = vrot.lane.b32.xlu0 %v930, 64
      %v1281 = vpop.permute.xlu0 %1280
      %1282 = vrot.lane.b32.xlu0 %v931, 64
      %v1283 = vpop.permute.xlu0 %1282
      %1284 = vrot.lane.b32.xlu0 %v932, 64
      %v1285 = vpop.permute.xlu0 %1284
      %1286 = vrot.lane.b32.xlu0 %v933, 64
      %v1287 = vpop.permute.xlu0 %1286
      %1288 = vrot.lane.b32.xlu0 %v934, 64
      %v1289 = vpop.permute.xlu0 %1288
      %1290 = vrot.lane.b32.xlu0 %v935, 64
      %v1291 = vpop.permute.xlu0 %1290
      %1292 = vrot.lane.b32.xlu0 %v936, 64
      %v1293 = vpop.permute.xlu0 %1292
      %1294 = vrot.lane.b32.xlu0 %v937, 64
      %v1295 = vpop.permute.xlu0 %1294
      %v1312 = vmul.f32 %v906, %v1265
      %v1313 = vmul.f32 %v907, %v1267
      %v1314 = vmul.f32 %v908, %v1269
      %v1315 = vmul.f32 %v909, %v1271
      %v1316 = vmul.f32 %v910, %v1273
      %v1317 = vmul.f32 %v911, %v1275
      %v1318 = vmul.f32 %v912, %v1277
      %v1319 = vmul.f32 %v913, %v1279
      %v1320 = vmul.f32 %v914, %v1281
      %v1321 = vmul.f32 %v915, %v1283
      %v1322 = vmul.f32 %v916, %v1285
      %v1323 = vmul.f32 %v917, %v1287
      %v1324 = vmul.f32 %v918, %v1289
      %v1325 = vmul.f32 %v919, %v1291
      %v1326 = vmul.f32 %v920, %v1293
      %v1327 = vmul.f32 %v921, %v1295
      %v1328 = vsel %vm953, %v1312, 0.0
      %1329 = vadd.xlane.f32.xlu0 %v1328
      %v1330 = vpop.xlane.xlu0 %1329
      %v1331 = vsel %vm953, %v1313, 0.0
      %1332 = vadd.xlane.f32.xlu0 %v1331
      %v1333 = vpop.xlane.xlu0 %1332
      %v1334 = vsel %vm953, %v1314, 0.0
      %1335 = vadd.xlane.f32.xlu0 %v1334
      %v1336 = vpop.xlane.xlu0 %1335
      %v1337 = vsel %vm953, %v1315, 0.0
      %1338 = vadd.xlane.f32.xlu0 %v1337
      %v1339 = vpop.xlane.xlu0 %1338
      %v1340 = vsel %vm953, %v1316, 0.0
      %1341 = vadd.xlane.f32.xlu0 %v1340
      %v1342 = vpop.xlane.xlu0 %1341
      %v1343 = vsel %vm953, %v1317, 0.0
      %1344 = vadd.xlane.f32.xlu0 %v1343
      %v1345 = vpop.xlane.xlu0 %1344
      %v1346 = vsel %vm953, %v1318, 0.0
      %1347 = vadd.xlane.f32.xlu0 %v1346
      %v1348 = vpop.xlane.xlu0 %1347
      %v1349 = vsel %vm953, %v1319, 0.0
      %1350 = vadd.xlane.f32.xlu0 %v1349
      %v1351 = vpop.xlane.xlu0 %1350
      %v1352 = vsel %vm953, %v1320, 0.0
      %1353 = vadd.xlane.f32.xlu0 %v1352
      %v1354 = vpop.xlane.xlu0 %1353
      %v1355 = vsel %vm953, %v1321, 0.0
      %1356 = vadd.xlane.f32.xlu0 %v1355
      %v1357 = vpop.xlane.xlu0 %1356
      %v1358 = vsel %vm953, %v1322, 0.0
      %1359 = vadd.xlane.f32.xlu0 %v1358
      %v1360 = vpop.xlane.xlu0 %1359
      %v1361 = vsel %vm953, %v1323, 0.0
      %1362 = vadd.xlane.f32.xlu0 %v1361
      %v1363 = vpop.xlane.xlu0 %1362
      %v1364 = vsel %vm953, %v1324, 0.0
      %1365 = vadd.xlane.f32.xlu0 %v1364
      %v1366 = vpop.xlane.xlu0 %1365
      %v1367 = vsel %vm953, %v1325, 0.0
      %1368 = vadd.xlane.f32.xlu0 %v1367
      %v1369 = vpop.xlane.xlu0 %1368
      %v1370 = vsel %vm953, %v1326, 0.0
      %1371 = vadd.xlane.f32.xlu0 %v1370
      %v1372 = vpop.xlane.xlu0 %1371
      %v1373 = vsel %vm953, %v1327, 0.0
      %1374 = vadd.xlane.f32.xlu0 %v1373
      %v1375 = vpop.xlane.xlu0 %1374
      %v1376 = vld [vmem:[%s7 + $0x1] sm:$0x1]
      %v1377 = vlaneseq
      %v1378 = vshrl.u32 %v1377, 7
      %v1379 = vsub.s32 0, %v1378
      %v1380 = vrot.slane %v1376, %v1379
      %v1381 = vmul.f32 %v1330, %v1380
      %v1382 = vmul.f32 %v1333, %v1380
      %v1383 = vmul.f32 %v1336, %v1380
      %v1384 = vmul.f32 %v1339, %v1380
      %v1385 = vmul.f32 %v1342, %v1380
      %v1386 = vmul.f32 %v1345, %v1380
      %v1387 = vmul.f32 %v1348, %v1380
      %v1388 = vmul.f32 %v1351, %v1380
      %v1389 = vmul.f32 %v1354, %v1380
      %v1390 = vmul.f32 %v1357, %v1380
      %v1391 = vmul.f32 %v1360, %v1380
      %v1392 = vmul.f32 %v1363, %v1380
      %v1393 = vmul.f32 %v1366, %v1380
      %v1394 = vmul.f32 %v1369, %v1380
      %v1395 = vmul.f32 %v1372, %v1380
      %v1396 = vmul.f32 %v1375, %v1380
      %v1397 = vadd.f32 %v1232, %v1381
      %v1398 = vadd.f32 %v1233, %v1382
      %v1399 = vadd.f32 %v1234, %v1383
      %v1400 = vadd.f32 %v1235, %v1384
      %v1401 = vadd.f32 %v1236, %v1385
      %v1402 = vadd.f32 %v1237, %v1386
      %v1403 = vadd.f32 %v1238, %v1387
      %v1404 = vadd.f32 %v1239, %v1388
      %v1405 = vadd.f32 %v1240, %v1389
      %v1406 = vadd.f32 %v1241, %v1390
      %v1407 = vadd.f32 %v1242, %v1391
      %v1408 = vadd.f32 %v1243, %v1392
      %v1409 = vadd.f32 %v1244, %v1393
      %v1410 = vadd.f32 %v1245, %v1394
      %v1411 = vadd.f32 %v1246, %v1395
      %v1412 = vadd.f32 %v1247, %v1396
      %v1413 = vmul.f32 %v922, %v1265
      %v1414 = vmul.f32 %v923, %v1267
      %v1415 = vmul.f32 %v924, %v1269
      %v1416 = vmul.f32 %v925, %v1271
      %v1417 = vmul.f32 %v926, %v1273
      %v1418 = vmul.f32 %v927, %v1275
      %v1419 = vmul.f32 %v928, %v1277
      %v1420 = vmul.f32 %v929, %v1279
      %v1421 = vmul.f32 %v930, %v1281
      %v1422 = vmul.f32 %v931, %v1283
      %v1423 = vmul.f32 %v932, %v1285
      %v1424 = vmul.f32 %v933, %v1287
      %v1425 = vmul.f32 %v934, %v1289
      %v1426 = vmul.f32 %v935, %v1291
      %v1427 = vmul.f32 %v936, %v1293
      %v1428 = vmul.f32 %v937, %v1295
      %v1429 = vsel %vm953, %v1413, 0.0
      %1430 = vadd.xlane.f32.xlu0 %v1429
      %v1431 = vpop.xlane.xlu0 %1430
      %v1432 = vsel %vm953, %v1414, 0.0
      %1433 = vadd.xlane.f32.xlu0 %v1432
      %v1434 = vpop.xlane.xlu0 %1433
      %v1435 = vsel %vm953, %v1415, 0.0
      %1436 = vadd.xlane.f32.xlu0 %v1435
      %v1437 = vpop.xlane.xlu0 %1436
      %v1438 = vsel %vm953, %v1416, 0.0
      %1439 = vadd.xlane.f32.xlu0 %v1438
      %v1440 = vpop.xlane.xlu0 %1439
      %v1441 = vsel %vm953, %v1417, 0.0
      %1442 = vadd.xlane.f32.xlu0 %v1441
      %v1443 = vpop.xlane.xlu0 %1442
      %v1444 = vsel %vm953, %v1418, 0.0
      %1445 = vadd.xlane.f32.xlu0 %v1444
      %v1446 = vpop.xlane.xlu0 %1445
      %v1447 = vsel %vm953, %v1419, 0.0
      %1448 = vadd.xlane.f32.xlu0 %v1447
      %v1449 = vpop.xlane.xlu0 %1448
      %v1450 = vsel %vm953, %v1420, 0.0
      %1451 = vadd.xlane.f32.xlu0 %v1450
      %v1452 = vpop.xlane.xlu0 %1451
      %v1453 = vsel %vm953, %v1421, 0.0
      %1454 = vadd.xlane.f32.xlu0 %v1453
      %v1455 = vpop.xlane.xlu0 %1454
      %v1456 = vsel %vm953, %v1422, 0.0
      %1457 = vadd.xlane.f32.xlu0 %v1456
      %v1458 = vpop.xlane.xlu0 %1457
      %v1459 = vsel %vm953, %v1423, 0.0
      %1460 = vadd.xlane.f32.xlu0 %v1459
      %v1461 = vpop.xlane.xlu0 %1460
      %v1462 = vsel %vm953, %v1424, 0.0
      %1463 = vadd.xlane.f32.xlu0 %v1462
      %v1464 = vpop.xlane.xlu0 %1463
      %v1465 = vsel %vm953, %v1425, 0.0
      %1466 = vadd.xlane.f32.xlu0 %v1465
      %v1467 = vpop.xlane.xlu0 %1466
      %v1468 = vsel %vm953, %v1426, 0.0
      %1469 = vadd.xlane.f32.xlu0 %v1468
      %v1470 = vpop.xlane.xlu0 %1469
      %v1471 = vsel %vm953, %v1427, 0.0
      %1472 = vadd.xlane.f32.xlu0 %v1471
      %v1473 = vpop.xlane.xlu0 %1472
      %v1474 = vsel %vm953, %v1428, 0.0
      %1475 = vadd.xlane.f32.xlu0 %v1474
      %v1476 = vpop.xlane.xlu0 %1475
      %v1477 = vld [vmem:[%s7 + $0x2] sm:$0x1]
      %v1478 = vlaneseq
      %v1479 = vshrl.u32 %v1478, 7
      %v1480 = vsub.s32 0, %v1479
      %v1481 = vrot.slane %v1477, %v1480
      %v1482 = vmul.f32 %v1431, %v1481
      %v1483 = vmul.f32 %v1434, %v1481
      %v1484 = vmul.f32 %v1437, %v1481
      %v1485 = vmul.f32 %v1440, %v1481
      %v1486 = vmul.f32 %v1443, %v1481
      %v1487 = vmul.f32 %v1446, %v1481
      %v1488 = vmul.f32 %v1449, %v1481
      %v1489 = vmul.f32 %v1452, %v1481
      %v1490 = vmul.f32 %v1455, %v1481
      %v1491 = vmul.f32 %v1458, %v1481
      %v1492 = vmul.f32 %v1461, %v1481
      %v1493 = vmul.f32 %v1464, %v1481
      %v1494 = vmul.f32 %v1467, %v1481
      %v1495 = vmul.f32 %v1470, %v1481
      %v1496 = vmul.f32 %v1473, %v1481
      %v1497 = vmul.f32 %v1476, %v1481
      %v1498 = vadd.f32 %v1397, %v1482
      %v1499 = vadd.f32 %v1398, %v1483
      %v1500 = vadd.f32 %v1399, %v1484
      %v1501 = vadd.f32 %v1400, %v1485
      %v1502 = vadd.f32 %v1401, %v1486
      %v1503 = vadd.f32 %v1402, %v1487
      %v1504 = vadd.f32 %v1403, %v1488
      %v1505 = vadd.f32 %v1404, %v1489
      %v1506 = vadd.f32 %v1405, %v1490
      %v1507 = vadd.f32 %v1406, %v1491
      %v1508 = vadd.f32 %v1407, %v1492
      %v1509 = vadd.f32 %v1408, %v1493
      %v1510 = vadd.f32 %v1409, %v1494
      %v1511 = vadd.f32 %v1410, %v1495
      %v1512 = vadd.f32 %v1411, %v1496
      %v1513 = vadd.f32 %v1412, %v1497
      %v1514 = vmax.f32 %v1498, 0.0
      %v1515 = vmax.f32 %v1499, 0.0
      %v1516 = vmax.f32 %v1500, 0.0
      %v1517 = vmax.f32 %v1501, 0.0
      %v1518 = vmax.f32 %v1502, 0.0
      %v1519 = vmax.f32 %v1503, 0.0
      %v1520 = vmax.f32 %v1504, 0.0
      %v1521 = vmax.f32 %v1505, 0.0
      %v1522 = vmax.f32 %v1506, 0.0
      %v1523 = vmax.f32 %v1507, 0.0
      %v1524 = vmax.f32 %v1508, 0.0
      %v1525 = vmax.f32 %v1509, 0.0
      %v1526 = vmax.f32 %v1510, 0.0
      %v1527 = vmax.f32 %v1511, 0.0
      %v1528 = vmax.f32 %v1512, 0.0
      %v1529 = vmax.f32 %v1513, 0.0
      %v1530 = vld [vmem:[%s9] sm:$0xff]
      %v1531 = vld [vmem:[%s9 + $0x8] sm:$0xff]
      %v1532 = vld [vmem:[%s9 + $0x10] sm:$0xff]
      %v1533 = vld [vmem:[%s9 + $0x18] sm:$0xff]
      %v1534 = vld [vmem:[%s9 + $0x20] sm:$0xff]
      %v1535 = vld [vmem:[%s9 + $0x28] sm:$0xff]
      %v1536 = vld [vmem:[%s9 + $0x30] sm:$0xff]
      %v1537 = vld [vmem:[%s9 + $0x38] sm:$0xff]
      %v1538 = vld [vmem:[%s9 + $0x40] sm:$0xff]
      %v1539 = vld [vmem:[%s9 + $0x48] sm:$0xff]
      %v1540 = vld [vmem:[%s9 + $0x50] sm:$0xff]
      %v1541 = vld [vmem:[%s9 + $0x58] sm:$0xff]
      %v1542 = vld [vmem:[%s9 + $0x60] sm:$0xff]
      %v1543 = vld [vmem:[%s9 + $0x68] sm:$0xff]
      %v1544 = vld [vmem:[%s9 + $0x70] sm:$0xff]
      %v1545 = vld [vmem:[%s9 + $0x78] sm:$0xff]
      %v1546 = vld [vmem:[%s10] sm:$0x1]
      %v1548 = vlaneseq
      %v1549 = vshrl.u32 %v1548, 7
      %v1550 = vsub.s32 0, %v1549
      %v1551 = vrot.slane %v1546, %v1550
      %1553 = vmatprep.subr.mxu0 0.0
      %1554 = vmatpush1.msra.mxu0 %v1530
      %1555 = vmatprep.subr.mxu0 0.0
      %1556 = vmatpush1.msra.mxu0 %v1531
      %1557 = vmatprep.subr.mxu0 0.0
      %1558 = vmatpush1.msra.mxu0 %v1532
      %1559 = vmatprep.subr.mxu0 0.0
      %1560 = vmatpush1.msra.mxu0 %v1533
      %1561 = vmatprep.subr.mxu0 0.0
      %1562 = vmatpush1.msra.mxu0 %v1534
      %1563 = vmatprep.subr.mxu0 0.0
      %1564 = vmatpush1.msra.mxu0 %v1535
      %1565 = vmatprep.subr.mxu0 0.0
      %1566 = vmatpush1.msra.mxu0 %v1536
      %1567 = vmatprep.subr.mxu0 0.0
      %1568 = vmatpush1.msra.mxu0 %v1537
      %1569 = vmatprep.subr.mxu0 0.0
      %1570 = vmatpush1.msra.mxu0 %v1538
      %1571 = vmatprep.subr.mxu0 0.0
      %1572 = vmatpush1.msra.mxu0 %v1539
      %1573 = vmatprep.subr.mxu0 0.0
      %1574 = vmatpush1.msra.mxu0 %v1540
      %1575 = vmatprep.subr.mxu0 0.0
      %1576 = vmatpush1.msra.mxu0 %v1541
      %1577 = vmatprep.subr.mxu0 0.0
      %1578 = vmatpush1.msra.mxu0 %v1542
      %1579 = vmatprep.subr.mxu0 0.0
      %1580 = vmatpush1.msra.mxu0 %v1543
      %1581 = vmatprep.subr.mxu0 0.0
      %1582 = vmatpush1.msra.mxu0 %v1544
      %1583 = vmatprep.subr.mxu0 0.0
      %1584 = vmatpush1.msra.mxu0 %v1545
      %1585 = vmatprep.subr.mxu0 0.0
      %1586 = vmatpush1.msra.mxu0 0.0
      %1587 = vmatprep.subr.mxu0 0.0
      %1588 = vmatpush1.msra.mxu0 0.0
      %1589 = vmatprep.subr.mxu0 0.0
      %1590 = vmatpush1.msra.mxu0 0.0
      %1591 = vmatprep.subr.mxu0 0.0
      %1592 = vmatpush1.msra.mxu0 0.0
      %1593 = vmatprep.subr.mxu0 0.0
      %1594 = vmatpush1.msra.mxu0 0.0
      %1595 = vmatprep.subr.mxu0 0.0
      %1596 = vmatpush1.msra.mxu0 0.0
      %1597 = vmatprep.subr.mxu0 0.0
      %1598 = vmatpush1.msra.mxu0 0.0
      %1599 = vmatprep.subr.mxu0 0.0
      %1600 = vmatpush1.msra.mxu0 0.0
      %1601 = vmatprep.subr.mxu0 0.0
      %1602 = vmatpush1.msra.mxu0 0.0
      %1603 = vmatprep.subr.mxu0 0.0
      %1604 = vmatpush1.msra.mxu0 0.0
      %1605 = vmatprep.subr.mxu0 0.0
      %1606 = vmatpush1.msra.mxu0 0.0
      %1607 = vmatprep.subr.mxu0 0.0
      %1608 = vmatpush1.msra.mxu0 0.0
      %1609 = vmatprep.subr.mxu0 0.0
      %1610 = vmatpush1.msra.mxu0 0.0
      %1611 = vmatprep.subr.mxu0 0.0
      %1612 = vmatpush1.msra.mxu0 0.0
      %1613 = vmatprep.subr.mxu0 0.0
      %1614 = vmatpush1.msra.mxu0 0.0
      %1615 = vmatprep.subr.mxu0 0.0
      %1616 = vmatpush1.msra.mxu0 0.0
      %1617 = vmatprep.mubr.f32.mxu0 0.0
      %1618 = vmatmul.mubr.f32.gmra.mrb[0].mxu0 %v1514
      %v1619 = vpop.f32.mrb[0].mxu0
      %v1620 = vadd.f32 %v1551, %v1619
      %v1621 = vpop.f32.mrb[0].mxu0
      %1622 = vmatprep.mubr.f32.mxu0 0.0
      %1623 = vmatmul.mubr.f32.gmra.mrb[0].mxu0 %v1515
      %v1624 = vpop.f32.mrb[0].mxu0
      %v1625 = vadd.f32 %v1551, %v1624
      %v1626 = vpop.f32.mrb[0].mxu0
      %1627 = vmatprep.mubr.f32.mxu0 0.0
      %1628 = vmatmul.mubr.f32.gmra.mrb[0].mxu0 %v1516
      %v1629 = vpop.f32.mrb[0].mxu0
      %v1630 = vadd.f32 %v1551, %v1629
      %v1631 = vpop.f32.mrb[0].mxu0
      %1632 = vmatprep.mubr.f32.mxu0 0.0
      %1633 = vmatmul.mubr.f32.gmra.mrb[0].mxu0 %v1517
      %v1634 = vpop.f32.mrb[0].mxu0
      %v1635 = vadd.f32 %v1551, %v1634
      %v1636 = vpop.f32.mrb[0].mxu0
      %1637 = vmatprep.mubr.f32.mxu0 0.0
      %1638 = vmatmul.mubr.f32.gmra.mrb[0].mxu0 %v1518
      %v1639 = vpop.f32.mrb[0].mxu0
      %v1640 = vadd.f32 %v1551, %v1639
      %v1641 = vpop.f32.mrb[0].mxu0
      %1642 = vmatprep.mubr.f32.mxu0 0.0
      %1643 = vmatmul.mubr.f32.gmra.mrb[0].mxu0 %v1519
      %v1644 = vpop.f32.mrb[0].mxu0
      %v1645 = vadd.f32 %v1551, %v1644
      %v1646 = vpop.f32.mrb[0].mxu0
      %1647 = vmatprep.mubr.f32.mxu0 0.0
      %1648 = vmatmul.mubr.f32.gmra.mrb[0].mxu0 %v1520
      %v1649 = vpop.f32.mrb[0].mxu0
      %v1650 = vadd.f32 %v1551, %v1649
      %v1651 = vpop.f32.mrb[0].mxu0
      %1652 = vmatprep.mubr.f32.mxu0 0.0
      %1653 = vmatmul.mubr.f32.gmra.mrb[0].mxu0 %v1521
      %v1654 = vpop.f32.mrb[0].mxu0
      %v1655 = vadd.f32 %v1551, %v1654
      %v1656 = vpop.f32.mrb[0].mxu0
      %1657 = vmatprep.mubr.f32.mxu0 0.0
      %1658 = vmatmul.mubr.f32.gmra.mrb[0].mxu0 %v1522
      %v1659 = vpop.f32.mrb[0].mxu0
      %v1660 = vadd.f32 %v1551, %v1659
      %v1661 = vpop.f32.mrb[0].mxu0
      %1662 = vmatprep.mubr.f32.mxu0 0.0
      %1663 = vmatmul.mubr.f32.gmra.mrb[0].mxu0 %v1523
      %v1664 = vpop.f32.mrb[0].mxu0
      %v1665 = vadd.f32 %v1551, %v1664
      %v1666 = vpop.f32.mrb[0].mxu0
      %1667 = vmatprep.mubr.f32.mxu0 0.0
      %1668 = vmatmul.mubr.f32.gmra.mrb[0].mxu0 %v1524
      %v1669 = vpop.f32.mrb[0].mxu0
      %v1670 = vadd.f32 %v1551, %v1669
      %v1671 = vpop.f32.mrb[0].mxu0
      %1672 = vmatprep.mubr.f32.mxu0 0.0
      %1673 = vmatmul.mubr.f32.gmra.mrb[0].mxu0 %v1525
      %v1674 = vpop.f32.mrb[0].mxu0
      %v1675 = vadd.f32 %v1551, %v1674
      %v1676 = vpop.f32.mrb[0].mxu0
      %1677 = vmatprep.mubr.f32.mxu0 0.0
      %1678 = vmatmul.mubr.f32.gmra.mrb[0].mxu0 %v1526
      %v1679 = vpop.f32.mrb[0].mxu0
      %v1680 = vadd.f32 %v1551, %v1679
      %v1681 = vpop.f32.mrb[0].mxu0
      %1682 = vmatprep.mubr.f32.mxu0 0.0
      %1683 = vmatmul.mubr.f32.gmra.mrb[0].mxu0 %v1527
      %v1684 = vpop.f32.mrb[0].mxu0
      %v1685 = vadd.f32 %v1551, %v1684
      %v1686 = vpop.f32.mrb[0].mxu0
      %1687 = vmatprep.mubr.f32.mxu0 0.0
      %1688 = vmatmul.mubr.f32.gmra.mrb[0].mxu0 %v1528
      %v1689 = vpop.f32.mrb[0].mxu0
      %v1690 = vadd.f32 %v1551, %v1689
      %v1691 = vpop.f32.mrb[0].mxu0
      %1692 = vmatprep.mubr.f32.mxu0 0.0
      %1693 = vmatmul.mubr.f32.gmra.mrb[0].mxu0 %v1529
      %v1694 = vpop.f32.mrb[0].mxu0
      %v1695 = vadd.f32 %v1551, %v1694
      %v1696 = vpop.f32.mrb[0].mxu0
      %1697 = vdwg.mxu0
      %v1698 = vmax.f32 %v1620, 0.0
      %v1699 = vmax.f32 %v1625, 0.0
      %v1700 = vmax.f32 %v1630, 0.0
      %v1701 = vmax.f32 %v1635, 0.0
      %v1702 = vmax.f32 %v1640, 0.0
      %v1703 = vmax.f32 %v1645, 0.0
      %v1704 = vmax.f32 %v1650, 0.0
      %v1705 = vmax.f32 %v1655, 0.0
      %v1706 = vmax.f32 %v1660, 0.0
      %v1707 = vmax.f32 %v1665, 0.0
      %v1708 = vmax.f32 %v1670, 0.0
      %v1709 = vmax.f32 %v1675, 0.0
      %v1710 = vmax.f32 %v1680, 0.0
      %v1711 = vmax.f32 %v1685, 0.0
      %v1712 = vmax.f32 %v1690, 0.0
      %v1713 = vmax.f32 %v1695, 0.0
      %v1714 = vld [vmem:[%s11] sm:$0x1]
      %v1715 = vld [vmem:[#allocation2] sm:$0x1]
      %1717 = vset.pattern.permute.xlu0 0
      %1718 = vperm.xlu0 %1717, %v1715
      %v1719 = vpop.permute.xlu0 %1718
      %v1721 = vlaneseq
      %v1722 = vshrl.u32 %v1721, 7
      %v1723 = vsub.s32 0, %v1722
      %v1724 = vrot.slane %v1719, %v1723
      %v1726 = vsel %vm953, %v1714, 0
      %v1729 = vsel %vm953, %v1698, 0
      %v1732 = vsel %vm953, %v1699, 0
      %v1735 = vsel %vm953, %v1700, 0
      %v1738 = vsel %vm953, %v1701, 0
      %v1741 = vsel %vm953, %v1702, 0
      %v1744 = vsel %vm953, %v1703, 0
      %v1747 = vsel %vm953, %v1704, 0
      %v1750 = vsel %vm953, %v1705, 0
      %v1753 = vsel %vm953, %v1706, 0
      %v1756 = vsel %vm953, %v1707, 0
      %v1759 = vsel %vm953, %v1708, 0
      %v1762 = vsel %vm953, %v1709, 0
      %v1765 = vsel %vm953, %v1710, 0
      %v1768 = vsel %vm953, %v1711, 0
      %v1771 = vsel %vm953, %v1712, 0
      %v1774 = vsel %vm953, %v1713, 0
      %1776 = vmatprep.subr.mxu0 0.0
      %1777 = vmatpush1.xpose.msra.mxu0 %v1729
      %1778 = vmatprep.subr.mxu0 0.0
      %1779 = vmatpush1.xpose.msra.mxu0 %v1732
      %1780 = vmatprep.subr.mxu0 0.0
      %1781 = vmatpush1.xpose.msra.mxu0 %v1735
      %1782 = vmatprep.subr.mxu0 0.0
      %1783 = vmatpush1.xpose.msra.mxu0 %v1738
      %1784 = vmatprep.subr.mxu0 0.0
      %1785 = vmatpush1.xpose.msra.mxu0 %v1741
      %1786 = vmatprep.subr.mxu0 0.0
      %1787 = vmatpush1.xpose.msra.mxu0 %v1744
      %1788 = vmatprep.subr.mxu0 0.0
      %1789 = vmatpush1.xpose.msra.mxu0 %v1747
      %1790 = vmatprep.subr.mxu0 0.0
      %1791 = vmatpush1.xpose.msra.mxu0 %v1750
      %1792 = vmatprep.subr.mxu0 0.0
      %1793 = vmatpush1.xpose.msra.mxu0 %v1753
      %1794 = vmatprep.subr.mxu0 0.0
      %1795 = vmatpush1.xpose.msra.mxu0 %v1756
      %1796 = vmatprep.subr.mxu0 0.0
      %1797 = vmatpush1.xpose.msra.mxu0 %v1759
      %1798 = vmatprep.subr.mxu0 0.0
      %1799 = vmatpush1.xpose.msra.mxu0 %v1762
      %1800 = vmatprep.subr.mxu0 0.0
      %1801 = vmatpush1.xpose.msra.mxu0 %v1765
      %1802 = vmatprep.subr.mxu0 0.0
      %1803 = vmatpush1.xpose.msra.mxu0 %v1768
      %1804 = vmatprep.subr.mxu0 0.0
      %1805 = vmatpush1.xpose.msra.mxu0 %v1771
      %1806 = vmatprep.subr.mxu0 0.0
      %1807 = vmatpush1.xpose.msra.mxu0 %v1774
      %1808 = vmatprep.subr.mxu0 0.0
      %1809 = vmatpush1.xpose.msra.mxu0 0.0
      %1810 = vmatprep.subr.mxu0 0.0
      %1811 = vmatpush1.xpose.msra.mxu0 0.0
      %1812 = vmatprep.subr.mxu0 0.0
      %1813 = vmatpush1.xpose.msra.mxu0 0.0
      %1814 = vmatprep.subr.mxu0 0.0
      %1815 = vmatpush1.xpose.msra.mxu0 0.0
      %1816 = vmatprep.subr.mxu0 0.0
      %1817 = vmatpush1.xpose.msra.mxu0 0.0
      %1818 = vmatprep.subr.mxu0 0.0
      %1819 = vmatpush1.xpose.msra.mxu0 0.0
      %1820 = vmatprep.subr.mxu0 0.0
      %1821 = vmatpush1.xpose.msra.mxu0 0.0
      %1822 = vmatprep.subr.mxu0 0.0
      %1823 = vmatpush1.xpose.msra.mxu0 0.0
      %1824 = vmatprep.subr.mxu0 0.0
      %1825 = vmatpush1.xpose.msra.mxu0 0.0
      %1826 = vmatprep.subr.mxu0 0.0
      %1827 = vmatpush1.xpose.msra.mxu0 0.0
      %1828 = vmatprep.subr.mxu0 0.0
      %1829 = vmatpush1.xpose.msra.mxu0 0.0
      %1830 = vmatprep.subr.mxu0 0.0
      %1831 = vmatpush1.xpose.msra.mxu0 0.0
      %1832 = vmatprep.subr.mxu0 0.0
      %1833 = vmatpush1.xpose.msra.mxu0 0.0
      %1834 = vmatprep.subr.mxu0 0.0
      %1835 = vmatpush1.xpose.msra.mxu0 0.0
      %1836 = vmatprep.subr.mxu0 0.0
      %1837 = vmatpush1.xpose.msra.mxu0 0.0
      %1838 = vmatprep.subr.mxu0 0.0
      %1839 = vmatpush1.xpose.msra.mxu0 0.0
      %1840 = vmatprep.mubr.f32.mxu0 0.0
      %1841 = vmatmul.mubr.f32.gmra.mrb[0].mxu0 %v1726
      %v1842 = vpop.f32.mrb[0].mxu0
      %v1843 = vadd.f32 %v1724, %v1842
      %v1844 = vpop.f32.mrb[0].mxu0
      %1845 = vdwg.mxu0
      %1846 = vst [vmem:[%s462] sm:$0x1] %v1843
      %p1847 = scmp.lt.s32.totalorder %s26, 1
      %s1848 = scalar_select %p1847, %s26, 1
      %s1849 = scalar_lea.vmem %s13, %s1848
      // Predicated region
      $region73: #{dlrm_predict.1} parent=71 // pred_check
        %p1850 = pneg %p327
      $region74: #{dlrm_predict.1} parent=71 // pred_check_branch
        %1852 = sbr.rel (%p1850) target = $region76
      $region75: #{dlrm_predict.1} parent=71 // pred_region
        _
      $region76: #{dlrm_predict.1} parent=71 // pred_fallthru
        _
    $region72: #{dlrm_predict.1} parent=5 // pred_fallthru
      _
    %p1853 = scmp.le.s32.totalorder 2, %s21
    // Predicated region
    $region77: #{dlrm_predict.1} parent=5 // pred_check
      %p1854 = pneg %p1853
    $region78: #{dlrm_predict.1} parent=5 // pred_check_branch
      %1856 = sbr.rel (%p1854) target = $region80
    $region79: #{dlrm_predict.1} parent=5 // pred_region
      %s1857 = ssub.s32 %s21, 2
      // Predicated region
      $region81: #{dlrm_predict.1} parent=79 // pred_check
        %p1858 = pneg %p333
      $region82: #{dlrm_predict.1} parent=79 // pred_check_branch
        %1860 = sbr.rel (%p1858) target = $region84
      $region83: #{dlrm_predict.1} parent=79 // pred_region
        %p1861 = scmp.lt.s32.totalorder %s27, 1
        %s1862 = scalar_select %p1861, %s27, 1
        %s1863 = scalar_lea.vmem %s13, %s1862
      $region84: #{dlrm_predict.1} parent=79 // pred_fallthru
        _
    $region80: #{dlrm_predict.1} parent=5 // pred_fallthru
      _
  $region6: #{dlrm_predict.1} parent=0 // loop_footer
    %s25 = sadd.s32 1, %s21
  $region7: #{dlrm_predict.1} parent=0 // loop_footer_branch
    %20 = sbr.rel target = $region3
  $region8: #{dlrm_predict.1} parent=0 // loop_exit
    _

</llo_original>
